<compile_context>
chip_gen: v6e
topology: v6e:2x2x1
jax: 0.10.0
libtpu: 0.0.40
codegen_flags: <defaults>
</compile_context>

<pallas_src>
import numpy as np
import jax
import jax.numpy as jnp
from jax import lax
from jax.experimental import pallas as pl
from jax.experimental.pallas import tpu as pltpu

# EmbeddingPropagation.__init__ defaults
ALPHA = 0.5
RBF_SCALE = 1.0
NORM_PROP = False

# Linear Neumann truncation: error <= alpha^(K+1)/(1-alpha) -> ~1e-7 at K=25.
NEUMANN_ITERS = max(8, int(np.ceil(np.log(1e-7 * (1.0 - ALPHA)) / np.log(ALPHA))))
# Doubling form covers 2^m series terms with m z-updates + (m-1) squarings.
DOUBLING_STEPS = int(np.ceil(np.log2(NEUMANN_ITERS)))


def _make_kernel(n, c, c_pad, use_doubling):
    inv_sqrt_c = np.float32(1.0 / np.sqrt(c))
    alpha = np.float32(ALPHA)
    rbf = np.float32(RBF_SCALE)
    f32 = jnp.float32

    def kernel(x_ref, out_ref):
        x = x_ref[...]                                              # (n, c_pad) f32

        diag = (lax.broadcasted_iota(jnp.int32, (n, n), 0) ==
                lax.broadcasted_iota(jnp.int32, (n, n), 1))

        # ---- get_similarity_matrix -----------------------------------------
        # Pairwise squared distances via the Gram matrix (MXU).
        gram = lax.dot_general(x, x, (((1,), (1,)), ((), ())),
                               preferred_element_type=f32)          # (n, n)
        xx = x * x
        sqn_col = jnp.sum(xx, axis=-1, keepdims=True)               # (n, 1)
        # (1, n) row of squared norms via a tiny MXU matmul: no masked (n,n)
        # select, no sublane (XLU) reduce, no degenerate-shape transpose.
        ones_1c = jnp.ones((1, c_pad), f32)
        sqn_row = lax.dot_general(ones_1c, xx, (((1,), (1,)), ((), ())),
                                  preferred_element_type=f32)       # (1, n)

        sq_dist = (sqn_col + sqn_row - 2.0 * gram) * inv_sqrt_c
        sq_dist = jnp.maximum(sq_dist, 0.0)        # clamp fp cancellation
        sq_dist = jnp.where(diag, 0.0, sq_dist)    # exact zeros on the diagonal

        # Unbiased std over non-zero entries, single fused pass:
        #   var = (sum(d^2) - sum(d)^2 / m) / (m - 1)
        # (masked-out entries are exactly 0, so they vanish from both sums).
        maskf = (sq_dist != 0.0).astype(f32)
        m = jnp.sum(maskf)
        s1 = jnp.sum(sq_dist)
        s2 = jnp.sum(sq_dist * sq_dist)
        var = (s2 - s1 * s1 / m) / (m - 1.0)
        sq_dist = sq_dist * lax.rsqrt(var)

        weights = jnp.exp(-sq_dist * rbf)
        weights = jnp.where(diag, 0.0, weights)     # zero the diagonal

        # ---- global_consistency ---------------------------------------------
        rowsum_col = jnp.sum(weights, axis=-1, keepdims=True)       # (n, 1)
        # W symmetric: column sums == row sums; obtain the (1,n) version with
        # one small MXU matmul instead of a second full sublane reduce.
        ones_1n = jnp.ones((1, n), f32)
        rowsum_row = jnp.dot(ones_1n, weights, preferred_element_type=f32)
        d_col = lax.rsqrt(1e-4 + rowsum_col)                        # (n, 1)
        d_row = lax.rsqrt(1e-4 + rowsum_row)                        # (1, n)
        # Fold alpha into S once -> the propagate loop is pure matmul + add.
        A0 = (weights * (alpha * d_col)) * d_row                    # alpha * S

        # ---- propagator @ x ---------------------------------------------------
        rhs = x
        if NORM_PROP:
            # P >= 0 elementwise, so its L1 row-norm equals P @ 1: propagate an
            # extra all-ones column (padded lane `c`) and divide at the end.
            lane = lax.broadcasted_iota(jnp.int32, (n, c_pad), 1)
            rhs = jnp.where(lane == c, 1.0, rhs)

        if use_doubling:
            # z_m = sum_{k < 2^m} (alpha*S)^k rhs via operator doubling:
            #   z <- z + A @ z ;  A <- A @ A   (last squaring skipped)
            # ~9 matmuls on the serial chain instead of NEUMANN_ITERS, fully
            # unrolled so the LLO scheduler sees the whole chain.
            z = rhs
            A = A0
            for i in range(DOUBLING_STEPS):
                z = z + jnp.dot(A, z, preferred_element_type=f32)
                if i + 1 < DOUBLING_STEPS:
                    A = jnp.dot(A, A, preferred_element_type=f32)
        else:
            # Large-n / narrow-c regime: O(n^2 c) linear recursion, unrolled.
            def body(_, z):
                return rhs + jnp.dot(A0, z, preferred_element_type=f32)
            z = lax.fori_loop(0, NEUMANN_ITERS, body, rhs, unroll=True)

        if NORM_PROP:
            z = z / jnp.maximum(z[:, c:c + 1], 1e-12)

        out_ref[...] = z                                             # lane-dense store

    return kernel


def embedding_propagation_pallas(x):
    """x: (n, c) float embeddings. Returns (n, c) = inv(I - alpha*S) @ x."""
    n, c = x.shape
    c_pad = ((c + 127) // 128) * 128
    if NORM_PROP and c_pad == c:
        c_pad += 128                       # spare lane column for the ones trick
    x_pad = jnp.pad(x.astype(jnp.float32), ((0, 0), (0, c_pad - c)))

    # Doubling pays off when the (n,n)@(n,n) squarings cost less than the
    # linear-chain z-updates they eliminate:  n*(m-1) <= (K-m)*c_pad.
    use_doubling = (
        (DOUBLING_STEPS - 1) * n <= (NEUMANN_ITERS - DOUBLING_STEPS) * c_pad
    )

    # Working set: W / S / A + matmul temporaries (~8 (n,n) f32) plus a handful
    # of (n, c_pad) activations, with headroom for compiler scratch.
    est = (8 * n * n + 10 * n * c_pad) * 4 + (4 << 20)
    try:
        vmem_cap = int(pltpu.get_tpu_info().vmem_capacity_bytes)
    except Exception:
        vmem_cap = 64 << 20                # conservative (v7x per-core VMEM)
    cap = int(0.85 * vmem_cap)             # never request the full physical VMEM
    vmem_limit = int(min(max(est, 16 << 20), cap))

    # TODO(synk): for batches of episodes add a leading grid axis with
    # dimension_semantics=("parallel",) (uses both v7x TensorCores); for n large
    # enough that the (n,n) temporaries bust VMEM, keep S/A in bf16 or stream
    # the linear Neumann form over row blocks instead of this single invocation.
    out = pl.pallas_call(
        _make_kernel(n, c, c_pad, use_doubling),
        out_shape=jax.ShapeDtypeStruct((n, c_pad), jnp.float32),
        in_specs=[pl.BlockSpec(memory_space=pltpu.MemorySpace.VMEM)],
        out_specs=pl.BlockSpec(memory_space=pltpu.MemorySpace.VMEM),
        compiler_params=pltpu.CompilerParams(vmem_limit_bytes=vmem_limit),
    )(x_pad)
    return out[:, :c]


def _reference(x):
    """Pure-JAX mirror of the PyTorch EmbeddingPropagation.forward."""
    b, c = x.shape
    diff = x[:, None, :] - x[None, :, :]
    sq = jnp.sum(diff ** 2, -1) / np.sqrt(c)
    mask = sq != 0
    m = jnp.sum(mask.astype(jnp.float32))
    mean = jnp.sum(jnp.where(mask, sq, 0.0)) / m
    var = jnp.sum(jnp.where(mask, (sq - mean) ** 2, 0.0)) / (m - 1.0)
    sq = sq / jnp.sqrt(var)
    w = jnp.exp(-sq * RBF_SCALE) * (1.0 - jnp.eye(b))
    isq = 1.0 / jnp.sqrt(1e-4 + jnp.sum(w, -1))
    S = w * isq[None, :] * isq[:, None]
    P = jnp.linalg.inv(jnp.eye(b) - ALPHA * S)
    if NORM_PROP:
        P = P / jnp.maximum(jnp.sum(jnp.abs(P), -1, keepdims=True), 1e-12)
    return P @ x


if __name__ == "__main__":
    key = jax.random.PRNGKey(0)
    n, c = 64, 32                      # small episode: 64 samples, 32-dim embeddings
    x = jax.random.normal(key, (n, c), dtype=jnp.float32)

    out = embedding_propagation_pallas(x)
    out = jax.block_until_ready(out)

    ref = _reference(x)
    np.testing.assert_allclose(np.asarray(out), np.asarray(ref),
                               rtol=5e-3, atol=5e-3)
    print("KERNEL_OK")
</pallas_src>

<mosaic_0001>
module attributes {stable_mosaic.version = 11 : i64} {
  func.func @kernel(%arg0: memref<64x128xf32, #tpu.memory_space<vmem>>, %arg1: memref<64x128xf32, #tpu.memory_space<vmem>>) attributes {dimension_semantics = [], scalar_prefetch = 0 : i64, scratch_operands = 0 : i64, tpu.core_type = #tpu.core_type<tc>} {
    %c0 = arith.constant 0 : index
    %c0_0 = arith.constant 0 : index
    %0 = vector.load %arg0[%c0, %c0_0] : memref<64x128xf32, #tpu.memory_space<vmem>>, vector<64x128xf32>
    %1 = tpu.iota {dimensions = array<i32: 0>} : vector<64x64xi32>
    %2 = tpu.iota {dimensions = array<i32: 1>} : vector<64x64xi32>
    %3 = arith.cmpi eq, %1, %2 : vector<64x64xi32>
    %cst = arith.constant dense<0.000000e+00> : vector<64x64xf32>
    %4 = tpu.matmul %0, %0, %cst {dimension_numbers = #tpu.dot_dimension_numbers<[1], [1], [0], [0], [0, 0, 1, 0], [], []>} : vector<64x128xf32>, vector<64x128xf32>, vector<64x64xf32> -> vector<64x64xf32>
    %5 = arith.mulf %0, %0 : vector<64x128xf32>
    %cst_1 = arith.constant dense<0.000000e+00> : vector<64xf32>
    %6 = vector.multi_reduction <add>, %5, %cst_1 [1] : vector<64x128xf32> to vector<64xf32>
    %7 = vector.shape_cast %6 : vector<64xf32> to vector<64x1xf32>
    %cst_2 = arith.constant 1.000000e+00 : f32
    %8 = vector.broadcast %cst_2 : f32 to vector<1x128xf32>
    %cst_3 = arith.constant dense<0.000000e+00> : vector<1x64xf32>
    %9 = tpu.matmul %8, %5, %cst_3 {dimension_numbers = #tpu.dot_dimension_numbers<[1], [1], [0], [0], [0, 0, 1, 0], [], []>} : vector<1x128xf32>, vector<64x128xf32>, vector<1x64xf32> -> vector<1x64xf32>
    %10 = vector.broadcast %7 : vector<64x1xf32> to vector<64x64xf32>
    %11 = vector.broadcast %9 : vector<1x64xf32> to vector<64x64xf32>
    %12 = arith.addf %10, %11 : vector<64x64xf32>
    %cst_4 = arith.constant 2.000000e+00 : f32
    %13 = vector.broadcast %cst_4 : f32 to vector<64x64xf32>
    %14 = arith.mulf %13, %4 : vector<64x64xf32>
    %15 = arith.subf %12, %14 : vector<64x64xf32>
    %cst_5 = arith.constant 0.176776692 : f32
    %16 = vector.broadcast %cst_5 : f32 to vector<64x64xf32>
    %17 = arith.mulf %15, %16 : vector<64x64xf32>
    %cst_6 = arith.constant 0.000000e+00 : f32
    %18 = vector.broadcast %cst_6 : f32 to vector<64x64xf32>
    %19 = arith.maximumf %17, %18 : vector<64x64xf32>
    %cst_7 = arith.constant 0.000000e+00 : f32
    %20 = vector.broadcast %cst_7 : f32 to vector<64x64xf32>
    %21 = arith.select %3, %20, %19 : vector<64x64xi1>, vector<64x64xf32>
    %cst_8 = arith.constant 0.000000e+00 : f32
    %22 = vector.broadcast %cst_8 : f32 to vector<64x64xf32>
    %23 = arith.cmpf one, %21, %22 : vector<64x64xf32>
    %24 = arith.extui %23 : vector<64x64xi1> to vector<64x64xi32>
    %25 = arith.sitofp %24 : vector<64x64xi32> to vector<64x64xf32>
    %26 = vector.shape_cast %25 : vector<64x64xf32> to vector<1x64x64xf32>
    %cst_9 = arith.constant dense<0.000000e+00> : vector<1xf32>
    %27 = vector.multi_reduction <add>, %26, %cst_9 [1, 2] : vector<1x64x64xf32> to vector<1xf32>
    %28 = vector.shape_cast %27 : vector<1xf32> to vector<1x1x1xf32>
    %29 = vector.extract %28[0, 0, 0] : f32 from vector<1x1x1xf32>
    %30 = vector.shape_cast %21 : vector<64x64xf32> to vector<1x64x64xf32>
    %cst_10 = arith.constant dense<0.000000e+00> : vector<1xf32>
    %31 = vector.multi_reduction <add>, %30, %cst_10 [1, 2] : vector<1x64x64xf32> to vector<1xf32>
    %32 = vector.shape_cast %31 : vector<1xf32> to vector<1x1x1xf32>
    %33 = vector.extract %32[0, 0, 0] : f32 from vector<1x1x1xf32>
    %34 = arith.mulf %21, %21 : vector<64x64xf32>
    %35 = vector.shape_cast %34 : vector<64x64xf32> to vector<1x64x64xf32>
    %cst_11 = arith.constant dense<0.000000e+00> : vector<1xf32>
    %36 = vector.multi_reduction <add>, %35, %cst_11 [1, 2] : vector<1x64x64xf32> to vector<1xf32>
    %37 = vector.shape_cast %36 : vector<1xf32> to vector<1x1x1xf32>
    %38 = vector.extract %37[0, 0, 0] : f32 from vector<1x1x1xf32>
    %39 = arith.mulf %33, %33 : f32
    %40 = arith.divf %39, %29 : f32
    %41 = arith.subf %38, %40 : f32
    %cst_12 = arith.constant 1.000000e+00 : f32
    %42 = arith.subf %29, %cst_12 : f32
    %43 = arith.divf %41, %42 : f32
    %44 = math.rsqrt %43 : f32
    %45 = vector.broadcast %44 : f32 to vector<64x64xf32>
    %46 = arith.mulf %21, %45 : vector<64x64xf32>
    %cst_13 = arith.constant 0.000000e+00 : f32
    %47 = vector.broadcast %cst_13 : f32 to vector<64x64xf32>
    %48 = arith.subf %47, %46 : vector<64x64xf32>
    %cst_14 = arith.constant 1.000000e+00 : f32
    %49 = vector.broadcast %cst_14 : f32 to vector<64x64xf32>
    %50 = arith.mulf %48, %49 : vector<64x64xf32>
    %51 = math.exp %50 : vector<64x64xf32>
    %cst_15 = arith.constant 0.000000e+00 : f32
    %52 = vector.broadcast %cst_15 : f32 to vector<64x64xf32>
    %53 = arith.select %3, %52, %51 : vector<64x64xi1>, vector<64x64xf32>
    %cst_16 = arith.constant dense<0.000000e+00> : vector<64xf32>
    %54 = vector.multi_reduction <add>, %53, %cst_16 [1] : vector<64x64xf32> to vector<64xf32>
    %55 = vector.shape_cast %54 : vector<64xf32> to vector<64x1xf32>
    %cst_17 = arith.constant 1.000000e+00 : f32
    %56 = vector.broadcast %cst_17 : f32 to vector<1x64xf32>
    %cst_18 = arith.constant dense<0.000000e+00> : vector<1x64xf32>
    %57 = tpu.matmul %56, %53, %cst_18 {dimension_numbers = #tpu.dot_dimension_numbers<[1], [0], [0], [1], [0, 0, 1, 1], [], []>} : vector<1x64xf32>, vector<64x64xf32>, vector<1x64xf32> -> vector<1x64xf32>
    %cst_19 = arith.constant 9.99999974E-5 : f32
    %58 = vector.broadcast %cst_19 : f32 to vector<64x1xf32>
    %59 = arith.addf %58, %55 : vector<64x1xf32>
    %60 = math.rsqrt %59 : vector<64x1xf32>
    %cst_20 = arith.constant 9.99999974E-5 : f32
    %61 = vector.broadcast %cst_20 : f32 to vector<1x64xf32>
    %62 = arith.addf %61, %57 : vector<1x64xf32>
    %63 = math.rsqrt %62 : vector<1x64xf32>
    %cst_21 = arith.constant 5.000000e-01 : f32
    %64 = vector.broadcast %cst_21 : f32 to vector<64x1xf32>
    %65 = arith.mulf %64, %60 : vector<64x1xf32>
    %66 = vector.broadcast %65 : vector<64x1xf32> to vector<64x64xf32>
    %67 = arith.mulf %53, %66 : vector<64x64xf32>
    %68 = vector.broadcast %63 : vector<1x64xf32> to vector<64x64xf32>
    %69 = arith.mulf %67, %68 : vector<64x64xf32>
    %cst_22 = arith.constant dense<0.000000e+00> : vector<64x128xf32>
    %70 = tpu.matmul %69, %0, %cst_22 {dimension_numbers = #tpu.dot_dimension_numbers<[1], [0], [0], [1], [0, 0, 1, 1], [], []>} : vector<64x64xf32>, vector<64x128xf32>, vector<64x128xf32> -> vector<64x128xf32>
    %71 = arith.addf %0, %70 : vector<64x128xf32>
    %cst_23 = arith.constant dense<0.000000e+00> : vector<64x64xf32>
    %72 = tpu.matmul %69, %69, %cst_23 {dimension_numbers = #tpu.dot_dimension_numbers<[1], [0], [0], [1], [0, 0, 1, 1], [], []>} : vector<64x64xf32>, vector<64x64xf32>, vector<64x64xf32> -> vector<64x64xf32>
    %cst_24 = arith.constant dense<0.000000e+00> : vector<64x128xf32>
    %73 = tpu.matmul %72, %71, %cst_24 {dimension_numbers = #tpu.dot_dimension_numbers<[1], [0], [0], [1], [0, 0, 1, 1], [], []>} : vector<64x64xf32>, vector<64x128xf32>, vector<64x128xf32> -> vector<64x128xf32>
    %74 = arith.addf %71, %73 : vector<64x128xf32>
    %cst_25 = arith.constant dense<0.000000e+00> : vector<64x64xf32>
    %75 = tpu.matmul %72, %72, %cst_25 {dimension_numbers = #tpu.dot_dimension_numbers<[1], [0], [0], [1], [0, 0, 1, 1], [], []>} : vector<64x64xf32>, vector<64x64xf32>, vector<64x64xf32> -> vector<64x64xf32>
    %cst_26 = arith.constant dense<0.000000e+00> : vector<64x128xf32>
    %76 = tpu.matmul %75, %74, %cst_26 {dimension_numbers = #tpu.dot_dimension_numbers<[1], [0], [0], [1], [0, 0, 1, 1], [], []>} : vector<64x64xf32>, vector<64x128xf32>, vector<64x128xf32> -> vector<64x128xf32>
    %77 = arith.addf %74, %76 : vector<64x128xf32>
    %cst_27 = arith.constant dense<0.000000e+00> : vector<64x64xf32>
    %78 = tpu.matmul %75, %75, %cst_27 {dimension_numbers = #tpu.dot_dimension_numbers<[1], [0], [0], [1], [0, 0, 1, 1], [], []>} : vector<64x64xf32>, vector<64x64xf32>, vector<64x64xf32> -> vector<64x64xf32>
    %cst_28 = arith.constant dense<0.000000e+00> : vector<64x128xf32>
    %79 = tpu.matmul %78, %77, %cst_28 {dimension_numbers = #tpu.dot_dimension_numbers<[1], [0], [0], [1], [0, 0, 1, 1], [], []>} : vector<64x64xf32>, vector<64x128xf32>, vector<64x128xf32> -> vector<64x128xf32>
    %80 = arith.addf %77, %79 : vector<64x128xf32>
    %cst_29 = arith.constant dense<0.000000e+00> : vector<64x64xf32>
    %81 = tpu.matmul %78, %78, %cst_29 {dimension_numbers = #tpu.dot_dimension_numbers<[1], [0], [0], [1], [0, 0, 1, 1], [], []>} : vector<64x64xf32>, vector<64x64xf32>, vector<64x64xf32> -> vector<64x64xf32>
    %cst_30 = arith.constant dense<0.000000e+00> : vector<64x128xf32>
    %82 = tpu.matmul %81, %80, %cst_30 {dimension_numbers = #tpu.dot_dimension_numbers<[1], [0], [0], [1], [0, 0, 1, 1], [], []>} : vector<64x64xf32>, vector<64x128xf32>, vector<64x128xf32> -> vector<64x128xf32>
    %83 = arith.addf %80, %82 : vector<64x128xf32>
    %c0_31 = arith.constant 0 : index
    %c0_32 = arith.constant 0 : index
    %84 = vector.load %arg1[%c0_31, %c0_32] : memref<64x128xf32, #tpu.memory_space<vmem>>, vector<64x128xf32>
    tpu.vector_store %arg1[%c0_31, %c0_32], %83 {strides = array<i32>} : memref<64x128xf32, #tpu.memory_space<vmem>>, vector<64x128xf32>,
    return
  }
}

</mosaic_0001>

<llo_original>
// kernel: tpu_custom_call.1
$region0: #{tpu_custom_call.1}
  #allocation0 [shape = 'u32[]', space=smem, size = 0x4, offset = 0x4, fixed_abs, tag = 'smem constant byte address 0x4 - core index']
  #allocation1 [shape = 'u32[144,128]{1,0:T(1,128)}', space=vmem, size = 0x12000, scoped, tag = 'internal scratch']
  %s0 = inlined_call_operand.hbm [shape: f32[64,128], index: 0, kind: input, shape index: {}]
  %s1 = inlined_call_operand.hbm [shape: f32[64,128], index: 1, kind: output, shape index: {}]
  %s2 = sld [smem:[#allocation0]]
  $region18: #{tpu_custom_call.1} parent=0
    _
  %s4 = ssub.s32 1, %s2
  %s5 = scalar_select 0, %s4, %s2
  $region1: #{tpu_custom_call.1} parent=0
    #allocation2 [shape = 'u8[32768]{0}', space=vmem, size = 0x8000, scoped, tag = 'input window, operand 0, single buffered']
    #allocation3 [shape = 's32[1]{0}', space=sflag, size = 0x4, scoped, tag = 'scoped memory for tpu_custom_call.1']
    #allocation4 [shape = 's32[1]{0}', space=sflag, size = 0x4, scoped, tag = 'scoped memory for tpu_custom_call.1']
    #allocation5 [shape = 'u8[32768]{0}', space=vmem, size = 0x8000, scoped, tag = 'output window, operand 0, single buffered']
    %6 = vsyncpa [#allocation3], 0
    %7 = vsyncpa [#allocation4], 0
    // Predicated region
    $region2: #{tpu_custom_call.1} parent=1 // pred_check
      _
    $region3: #{tpu_custom_call.1} parent=1 // pred_check_branch
      %9 = sbr.rel (0) target = $region5
    $region4: #{tpu_custom_call.1} parent=1 // pred_region
      %s11 = ssub.s32 1024, 1024
      %12 = vsyncadd [#allocation3], %s11
      %s13 = sshll.u32 [#allocation2], 4
      %s14 = int_to_ptr.vmem [resolvable:$true] %s13
      %19 = dma.hbm_to_vmem [thread:$0]  %s0, 1024, %s14, [#allocation3], 128, 128, 8
    $region5: #{tpu_custom_call.1} parent=1 // pred_fallthru
      _
    // Predicated region
    $region6: #{tpu_custom_call.1} parent=1 // pred_check
      _
    $region7: #{tpu_custom_call.1} parent=1 // pred_check_branch
      %21 = sbr.rel (0) target = $region9
    $region8: #{tpu_custom_call.1} parent=1 // pred_region
      %22 = dma.done [#allocation3], 1024
    $region9: #{tpu_custom_call.1} parent=1 // pred_fallthru
      _
    %v23 = vld [vmem:[#allocation2] sm:$0xff]
    %v24 = vld [vmem:[#allocation2 + $0x8] sm:$0xff]
    %v25 = vld [vmem:[#allocation2 + $0x10] sm:$0xff]
    %v26 = vld [vmem:[#allocation2 + $0x18] sm:$0xff]
    %v27 = vld [vmem:[#allocation2 + $0x20] sm:$0xff]
    %v28 = vld [vmem:[#allocation2 + $0x28] sm:$0xff]
    %v29 = vld [vmem:[#allocation2 + $0x30] sm:$0xff]
    %v30 = vld [vmem:[#allocation2 + $0x38] sm:$0xff]
    %v31 = vlaneseq
    %v32 = vshrl.u32 %v31, 7
    %v33 = vadd.s32 %v32, 8
    %v34 = vadd.s32 %v32, 16
    %v35 = vadd.s32 %v32, 24
    %v36 = vadd.s32 %v32, 32
    %v37 = vadd.s32 %v32, 40
    %v38 = vadd.s32 %v32, 48
    %v39 = vadd.s32 %v32, 56
    %v40 = vlaneseq
    %v41 = vand.u32 %v40, 127
    %vm42 = vcmp.eq.s32.totalorder %v32, %v41
    %vm43 = vcmp.eq.s32.totalorder %v33, %v41
    %vm44 = vcmp.eq.s32.totalorder %v34, %v41
    %vm45 = vcmp.eq.s32.totalorder %v35, %v41
    %vm46 = vcmp.eq.s32.totalorder %v36, %v41
    %vm47 = vcmp.eq.s32.totalorder %v37, %v41
    %vm48 = vcmp.eq.s32.totalorder %v38, %v41
    %vm49 = vcmp.eq.s32.totalorder %v39, %v41
    %50 = vmatprep.subr.mxu0 0.0
    %51 = vmatpush1.xpose.msra.mxu0 0.0
    %52 = vmatprep.subr.mxu0 0.0
    %53 = vmatpush1.xpose.msra.mxu0 0.0
    %54 = vmatprep.subr.mxu0 0.0
    %55 = vmatpush1.xpose.msra.mxu0 0.0
    %56 = vmatprep.subr.mxu0 0.0
    %57 = vmatpush1.xpose.msra.mxu0 0.0
    %58 = vmatprep.subr.mxu0 0.0
    %59 = vmatpush1.xpose.msra.mxu0 0.0
    %60 = vmatprep.subr.mxu0 0.0
    %61 = vmatpush1.xpose.msra.mxu0 0.0
    %62 = vmatprep.subr.mxu0 0.0
    %63 = vmatpush1.xpose.msra.mxu0 0.0
    %64 = vmatprep.subr.mxu0 0.0
    %65 = vmatpush1.xpose.msra.mxu0 0.0
    %66 = vmatprep.subr.mxu0 0.0
    %67 = vmatpush1.xpose.msra.mxu0 %v30
    %68 = vmatprep.subr.mxu0 0.0
    %69 = vmatpush1.xpose.msra.mxu0 %v29
    %70 = vmatprep.subr.mxu0 0.0
    %71 = vmatpush1.xpose.msra.mxu0 %v28
    %72 = vmatprep.subr.mxu0 0.0
    %73 = vmatpush1.xpose.msra.mxu0 %v27
    %74 = vmatprep.subr.mxu0 0.0
    %75 = vmatpush1.xpose.msra.mxu0 %v26
    %76 = vmatprep.subr.mxu0 0.0
    %77 = vmatpush1.xpose.msra.mxu0 %v25
    %78 = vmatprep.subr.mxu0 0.0
    %79 = vmatpush1.xpose.msra.mxu0 %v24
    %80 = vmatprep.subr.mxu0 0.0
    %81 = vmatpush1.xpose.msra.mxu0 %v23
    %82 = vmatprep.subr.mxu0 0.0
    %83 = vmatpush2.xpose.msra.mxu0 0.0
    %84 = vmatprep.subr.mxu0 0.0
    %85 = vmatpush2.xpose.msra.mxu0 0.0
    %86 = vmatprep.subr.mxu0 0.0
    %87 = vmatpush2.xpose.msra.mxu0 0.0
    %88 = vmatprep.subr.mxu0 0.0
    %89 = vmatpush2.xpose.msra.mxu0 0.0
    %90 = vmatprep.subr.mxu0 0.0
    %91 = vmatpush2.xpose.msra.mxu0 0.0
    %92 = vmatprep.subr.mxu0 0.0
    %93 = vmatpush2.xpose.msra.mxu0 0.0
    %94 = vmatprep.subr.mxu0 0.0
    %95 = vmatpush2.xpose.msra.mxu0 0.0
    %96 = vmatprep.subr.mxu0 0.0
    %97 = vmatpush2.xpose.msra.mxu0 0.0
    %98 = vmatprep.subr.mxu0 0.0
    %99 = vmatpush2.xpose.msra.mxu0 0.0
    %100 = vmatprep.subr.mxu0 0.0
    %101 = vmatpush2.xpose.msra.mxu0 0.0
    %102 = vmatprep.subr.mxu0 0.0
    %103 = vmatpush2.xpose.msra.mxu0 0.0
    %104 = vmatprep.subr.mxu0 0.0
    %105 = vmatpush2.xpose.msra.mxu0 0.0
    %106 = vmatprep.subr.mxu0 0.0
    %107 = vmatpush2.xpose.msra.mxu0 0.0
    %108 = vmatprep.subr.mxu0 0.0
    %109 = vmatpush2.xpose.msra.mxu0 0.0
    %110 = vmatprep.subr.mxu0 0.0
    %111 = vmatpush2.xpose.msra.mxu0 0.0
    %112 = vmatprep.subr.mxu0 0.0
    %113 = vmatpush2.xpose.msra.mxu0 0.0
    %114 = vmatprep.mubr.f32.mxu0 0.0
    %115 = vmatmul.mubr.f32.gmra.mxu0 %v23
    %v116 = vpop.f32.mrf.mxu0
    %v117 = vadd.f32 0.0, %v116
    %v118 = vpop.f32.mrf.mxu0
    %119 = vmatprep.mubr.f32.mxu0 0.0
    %120 = vmatmul.mubr.f32.gmra.mxu0 %v24
    %v121 = vpop.f32.mrf.mxu0
    %v122 = vadd.f32 0.0, %v121
    %v123 = vpop.f32.mrf.mxu0
    %124 = vmatprep.mubr.f32.mxu0 0.0
    %125 = vmatmul.mubr.f32.gmra.mxu0 %v25
    %v126 = vpop.f32.mrf.mxu0
    %v127 = vadd.f32 0.0, %v126
    %v128 = vpop.f32.mrf.mxu0
    %129 = vmatprep.mubr.f32.mxu0 0.0
    %130 = vmatmul.mubr.f32.gmra.mxu0 %v26
    %v131 = vpop.f32.mrf.mxu0
    %v132 = vadd.f32 0.0, %v131
    %v133 = vpop.f32.mrf.mxu0
    %134 = vmatprep.mubr.f32.mxu0 0.0
    %135 = vmatmul.mubr.f32.gmra.mxu0 %v27
    %v136 = vpop.f32.mrf.mxu0
    %v137 = vadd.f32 0.0, %v136
    %v138 = vpop.f32.mrf.mxu0
    %139 = vmatprep.mubr.f32.mxu0 0.0
    %140 = vmatmul.mubr.f32.gmra.mxu0 %v28
    %v141 = vpop.f32.mrf.mxu0
    %v142 = vadd.f32 0.0, %v141
    %v143 = vpop.f32.mrf.mxu0
    %144 = vmatprep.mubr.f32.mxu0 0.0
    %145 = vmatmul.mubr.f32.gmra.mxu0 %v29
    %v146 = vpop.f32.mrf.mxu0
    %v147 = vadd.f32 0.0, %v146
    %v148 = vpop.f32.mrf.mxu0
    %149 = vmatprep.mubr.f32.mxu0 0.0
    %150 = vmatmul.mubr.f32.gmra.mxu0 %v30
    %v151 = vpop.f32.mrf.mxu0
    %v152 = vadd.f32 0.0, %v151
    %v153 = vpop.f32.mrf.mxu0
    %154 = vdwg.mxu0
    %v155 = vmul.f32 %v23, %v23
    %v156 = vmul.f32 %v24, %v24
    %v157 = vmul.f32 %v25, %v25
    %v158 = vmul.f32 %v26, %v26
    %v159 = vmul.f32 %v27, %v27
    %v160 = vmul.f32 %v28, %v28
    %v161 = vmul.f32 %v29, %v29
    %v162 = vmul.f32 %v30, %v30
    %163 = vadd.xlane.f32.xlu0 %v155
    %v164 = vpop.xlane.xlu0 %163
    %165 = vadd.xlane.f32.xlu0 %v156
    %v166 = vpop.xlane.xlu0 %165
    %167 = vadd.xlane.f32.xlu0 %v157
    %v168 = vpop.xlane.xlu0 %167
    %169 = vadd.xlane.f32.xlu0 %v158
    %v170 = vpop.xlane.xlu0 %169
    %171 = vadd.xlane.f32.xlu0 %v159
    %v172 = vpop.xlane.xlu0 %171
    %173 = vadd.xlane.f32.xlu0 %v160
    %v174 = vpop.xlane.xlu0 %173
    %175 = vadd.xlane.f32.xlu0 %v161
    %v176 = vpop.xlane.xlu0 %175
    %177 = vadd.xlane.f32.xlu0 %v162
    %v178 = vpop.xlane.xlu0 %177
    %179 = vmatprep.subr.mxu0 0.0
    %180 = vmatpush1.xpose.msra.mxu0 0.0
    %181 = vmatprep.subr.mxu0 0.0
    %182 = vmatpush1.xpose.msra.mxu0 0.0
    %183 = vmatprep.subr.mxu0 0.0
    %184 = vmatpush1.xpose.msra.mxu0 0.0
    %185 = vmatprep.subr.mxu0 0.0
    %186 = vmatpush1.xpose.msra.mxu0 0.0
    %187 = vmatprep.subr.mxu0 0.0
    %188 = vmatpush1.xpose.msra.mxu0 0.0
    %189 = vmatprep.subr.mxu0 0.0
    %190 = vmatpush1.xpose.msra.mxu0 0.0
    %191 = vmatprep.subr.mxu0 0.0
    %192 = vmatpush1.xpose.msra.mxu0 0.0
    %193 = vmatprep.subr.mxu0 0.0
    %194 = vmatpush1.xpose.msra.mxu0 0.0
    %195 = vmatprep.subr.mxu0 0.0
    %196 = vmatpush1.xpose.msra.mxu0 %v162
    %197 = vmatprep.subr.mxu0 0.0
    %198 = vmatpush1.xpose.msra.mxu0 %v161
    %199 = vmatprep.subr.mxu0 0.0
    %200 = vmatpush1.xpose.msra.mxu0 %v160
    %201 = vmatprep.subr.mxu0 0.0
    %202 = vmatpush1.xpose.msra.mxu0 %v159
    %203 = vmatprep.subr.mxu0 0.0
    %204 = vmatpush1.xpose.msra.mxu0 %v158
    %205 = vmatprep.subr.mxu0 0.0
    %206 = vmatpush1.xpose.msra.mxu0 %v157
    %207 = vmatprep.subr.mxu0 0.0
    %208 = vmatpush1.xpose.msra.mxu0 %v156
    %209 = vmatprep.subr.mxu0 0.0
    %210 = vmatpush1.xpose.msra.mxu0 %v155
    %211 = vmatprep.subr.mxu0 0.0
    %212 = vmatpush2.xpose.msra.mxu0 0.0
    %213 = vmatprep.subr.mxu0 0.0
    %214 = vmatpush2.xpose.msra.mxu0 0.0
    %215 = vmatprep.subr.mxu0 0.0
    %216 = vmatpush2.xpose.msra.mxu0 0.0
    %217 = vmatprep.subr.mxu0 0.0
    %218 = vmatpush2.xpose.msra.mxu0 0.0
    %219 = vmatprep.subr.mxu0 0.0
    %220 = vmatpush2.xpose.msra.mxu0 0.0
    %221 = vmatprep.subr.mxu0 0.0
    %222 = vmatpush2.xpose.msra.mxu0 0.0
    %223 = vmatprep.subr.mxu0 0.0
    %224 = vmatpush2.xpose.msra.mxu0 0.0
    %225 = vmatprep.subr.mxu0 0.0
    %226 = vmatpush2.xpose.msra.mxu0 0.0
    %227 = vmatprep.subr.mxu0 0.0
    %228 = vmatpush2.xpose.msra.mxu0 0.0
    %229 = vmatprep.subr.mxu0 0.0
    %230 = vmatpush2.xpose.msra.mxu0 0.0
    %231 = vmatprep.subr.mxu0 0.0
    %232 = vmatpush2.xpose.msra.mxu0 0.0
    %233 = vmatprep.subr.mxu0 0.0
    %234 = vmatpush2.xpose.msra.mxu0 0.0
    %235 = vmatprep.subr.mxu0 0.0
    %236 = vmatpush2.xpose.msra.mxu0 0.0
    %237 = vmatprep.subr.mxu0 0.0
    %238 = vmatpush2.xpose.msra.mxu0 0.0
    %239 = vmatprep.subr.mxu0 0.0
    %240 = vmatpush2.xpose.msra.mxu0 0.0
    %241 = vmatprep.subr.mxu0 0.0
    %242 = vmatpush2.xpose.msra.mxu0 0.0
    %243 = vmatprep.mubr.f32.mxu0 0.0
    %244 = vmatmul.mubr.f32.gmra.mxu0 1.0
    %v245 = vpop.f32.mrf.mxu0
    %v246 = vadd.f32 0.0, %v245
    %v247 = vpop.f32.mrf.mxu0
    %248 = vdwg.mxu0
    %v249 = vlaneseq
    %v250 = vshrl.u32 %v249, 7
    %v251 = vsub.s32 0, %v250
    %v252 = vrot.slane %v246, %v251
    %v253 = vadd.f32 %v164, %v252
    %v254 = vadd.f32 %v166, %v252
    %v255 = vadd.f32 %v168, %v252
    %v256 = vadd.f32 %v170, %v252
    %v257 = vadd.f32 %v172, %v252
    %v258 = vadd.f32 %v174, %v252
    %v259 = vadd.f32 %v176, %v252
    %v260 = vadd.f32 %v178, %v252
    %v261 = vmul.f32 %v117, 2.0
    %v262 = vmul.f32 %v122, 2.0
    %v263 = vmul.f32 %v127, 2.0
    %v264 = vmul.f32 %v132, 2.0
    %v265 = vmul.f32 %v137, 2.0
    %v266 = vmul.f32 %v142, 2.0
    %v267 = vmul.f32 %v147, 2.0
    %v268 = vmul.f32 %v152, 2.0
    %v269 = vsub.f32 %v253, %v261
    %v270 = vsub.f32 %v254, %v262
    %v271 = vsub.f32 %v255, %v263
    %v272 = vsub.f32 %v256, %v264
    %v273 = vsub.f32 %v257, %v265
    %v274 = vsub.f32 %v258, %v266
    %v275 = vsub.f32 %v259, %v267
    %v276 = vsub.f32 %v260, %v268
    %v277 = vmul.f32 %v269, 0.17677669
    %v278 = vmul.f32 %v270, 0.17677669
    %v279 = vmul.f32 %v271, 0.17677669
    %v280 = vmul.f32 %v272, 0.17677669
    %v281 = vmul.f32 %v273, 0.17677669
    %v282 = vmul.f32 %v274, 0.17677669
    %v283 = vmul.f32 %v275, 0.17677669
    %v284 = vmul.f32 %v276, 0.17677669
    %v285 = vmax.f32 %v277, 0.0
    %v286 = vmax.f32 %v278, 0.0
    %v287 = vmax.f32 %v279, 0.0
    %v288 = vmax.f32 %v280, 0.0
    %v289 = vmax.f32 %v281, 0.0
    %v290 = vmax.f32 %v282, 0.0
    %v291 = vmax.f32 %v283, 0.0
    %v292 = vmax.f32 %v284, 0.0
    %v293 = vsel %vm42, 0.0, %v285
    %v294 = vsel %vm43, 0.0, %v286
    %v295 = vsel %vm44, 0.0, %v287
    %v296 = vsel %vm45, 0.0, %v288
    %v297 = vsel %vm46, 0.0, %v289
    %v298 = vsel %vm47, 0.0, %v290
    %v299 = vsel %vm48, 0.0, %v291
    %v300 = vsel %vm49, 0.0, %v292
    %vm301 = vcmp.ne.f32.partialorder %v293, 0.0
    %vm302 = vcmp.ne.f32.partialorder %v294, 0.0
    %vm303 = vcmp.ne.f32.partialorder %v295, 0.0
    %vm304 = vcmp.ne.f32.partialorder %v296, 0.0
    %vm305 = vcmp.ne.f32.partialorder %v297, 0.0
    %vm306 = vcmp.ne.f32.partialorder %v298, 0.0
    %vm307 = vcmp.ne.f32.partialorder %v299, 0.0
    %vm308 = vcmp.ne.f32.partialorder %v300, 0.0
    %v309 = vsel %vm301, 1, 0
    %v310 = vsel %vm302, 1, 0
    %v311 = vsel %vm303, 1, 0
    %v312 = vsel %vm304, 1, 0
    %v313 = vsel %vm305, 1, 0
    %v314 = vsel %vm306, 1, 0
    %v315 = vsel %vm307, 1, 0
    %v316 = vsel %vm308, 1, 0
    %v317 = vcvt.s32.f32 %v309
    %v318 = vcvt.s32.f32 %v310
    %v319 = vcvt.s32.f32 %v311
    %v320 = vcvt.s32.f32 %v312
    %v321 = vcvt.s32.f32 %v313
    %v322 = vcvt.s32.f32 %v314
    %v323 = vcvt.s32.f32 %v315
    %v324 = vcvt.s32.f32 %v316
    %vm325 = vcmask 523264
    %v326 = vsel %vm325, %v317, 0.0
    %v327 = vsel %vm325, %v318, 0.0
    %v328 = vadd.f32 %v326, %v327
    %v329 = vsel %vm325, %v319, 0.0
    %v330 = vadd.f32 %v328, %v329
    %v331 = vsel %vm325, %v320, 0.0
    %v332 = vadd.f32 %v330, %v331
    %v333 = vsel %vm325, %v321, 0.0
    %v334 = vadd.f32 %v332, %v333
    %v335 = vsel %vm325, %v322, 0.0
    %v336 = vadd.f32 %v334, %v335
    %v337 = vsel %vm325, %v323, 0.0
    %v338 = vadd.f32 %v336, %v337
    %v339 = vsel %vm325, %v324, 0.0
    %v340 = vadd.f32 %v338, %v339
    %341 = vadd.xlane.f32.xlu0 %v340
    %v342 = vpop.xlane.xlu0 %341
    %v343 = vrot.slane %v342, 4
    %v344 = vadd.f32 %v342, %v343
    %v345 = vrot.slane %v344, 2
    %v346 = vadd.f32 %v344, %v345
    %v347 = vrot.slane %v346, 1
    %v348 = vadd.f32 %v346, %v347
    %s349 = vtos %v348
    %v350 = vsel %vm325, %v293, 0.0
    %v351 = vsel %vm325, %v294, 0.0
    %v352 = vadd.f32 %v350, %v351
    %v353 = vsel %vm325, %v295, 0.0
    %v354 = vadd.f32 %v352, %v353
    %v355 = vsel %vm325, %v296, 0.0
    %v356 = vadd.f32 %v354, %v355
    %v357 = vsel %vm325, %v297, 0.0
    %v358 = vadd.f32 %v356, %v357
    %v359 = vsel %vm325, %v298, 0.0
    %v360 = vadd.f32 %v358, %v359
    %v361 = vsel %vm325, %v299, 0.0
    %v362 = vadd.f32 %v360, %v361
    %v363 = vsel %vm325, %v300, 0.0
    %v364 = vadd.f32 %v362, %v363
    %365 = vadd.xlane.f32.xlu0 %v364
    %v366 = vpop.xlane.xlu0 %365
    %v367 = vrot.slane %v366, 4
    %v368 = vadd.f32 %v366, %v367
    %v369 = vrot.slane %v368, 2
    %v370 = vadd.f32 %v368, %v369
    %v371 = vrot.slane %v370, 1
    %v372 = vadd.f32 %v370, %v371
    %s373 = vtos %v372
    %v374 = vmul.f32 %v293, %v293
    %v375 = vmul.f32 %v294, %v294
    %v376 = vmul.f32 %v295, %v295
    %v377 = vmul.f32 %v296, %v296
    %v378 = vmul.f32 %v297, %v297
    %v379 = vmul.f32 %v298, %v298
    %v380 = vmul.f32 %v299, %v299
    %v381 = vmul.f32 %v300, %v300
    %v382 = vsel %vm325, %v374, 0.0
    %v383 = vsel %vm325, %v375, 0.0
    %v384 = vadd.f32 %v382, %v383
    %v385 = vsel %vm325, %v376, 0.0
    %v386 = vadd.f32 %v384, %v385
    %v387 = vsel %vm325, %v377, 0.0
    %v388 = vadd.f32 %v386, %v387
    %v389 = vsel %vm325, %v378, 0.0
    %v390 = vadd.f32 %v388, %v389
    %v391 = vsel %vm325, %v379, 0.0
    %v392 = vadd.f32 %v390, %v391
    %v393 = vsel %vm325, %v380, 0.0
    %v394 = vadd.f32 %v392, %v393
    %v395 = vsel %vm325, %v381, 0.0
    %v396 = vadd.f32 %v394, %v395
    %397 = vadd.xlane.f32.xlu0 %v396
    %v398 = vpop.xlane.xlu0 %397
    %v399 = vrot.slane %v398, 4
    %v400 = vadd.f32 %v398, %v399
    %v401 = vrot.slane %v400, 2
    %v402 = vadd.f32 %v400, %v401
    %v403 = vrot.slane %v402, 1
    %v404 = vadd.f32 %v402, %v403
    %s405 = vtos %v404
    %s406 = smul.f32 %s373, %s373
    %v407 = vstv %s349
    %v408 = vrcp.pop %v407
    %s409 = vtos %v408
    %s410 = smul.f32 %s406, %s409
    %s411 = ssub.f32 %s405, %s410
    %s412 = ssub.f32 %s349, 1.0
    %v413 = vstv %s412
    %v414 = vrcp.pop %v413
    %s415 = vtos %v414
    %s416 = smul.f32 %s411, %s415
    %v417 = vstv %s416
    %v418 = vrsqrt.pop %v417
    %s419 = vtos %v418
    %v420 = vstv %s419
    %v421 = vmul.f32 %v293, %v420
    %v422 = vmul.f32 %v294, %v420
    %v423 = vmul.f32 %v295, %v420
    %v424 = vmul.f32 %v296, %v420
    %v425 = vmul.f32 %v297, %v420
    %v426 = vmul.f32 %v298, %v420
    %v427 = vmul.f32 %v299, %v420
    %v428 = vmul.f32 %v300, %v420
    %v429 = vsub.f32 0.0, %v421
    %v430 = vsub.f32 0.0, %v422
    %v431 = vsub.f32 0.0, %v423
    %v432 = vsub.f32 0.0, %v424
    %v433 = vsub.f32 0.0, %v425
    %v434 = vsub.f32 0.0, %v426
    %v435 = vsub.f32 0.0, %v427
    %v436 = vsub.f32 0.0, %v428
    %v437 = vmul.f32 %v429, 1.442695
    %v438 = vpow.pop %v437
    %v439 = vmul.f32 %v430, 1.442695
    %v440 = vpow.pop %v439
    %v441 = vmul.f32 %v431, 1.442695
    %v442 = vpow.pop %v441
    %v443 = vmul.f32 %v432, 1.442695
    %v444 = vpow.pop %v443
    %v445 = vmul.f32 %v433, 1.442695
    %v446 = vpow.pop %v445
    %v447 = vmul.f32 %v434, 1.442695
    %v448 = vpow.pop %v447
    %v449 = vmul.f32 %v435, 1.442695
    %v450 = vpow.pop %v449
    %v451 = vmul.f32 %v436, 1.442695
    %v452 = vpow.pop %v451
    %v453 = vsel %vm42, 0.0, %v438
    %v454 = vsel %vm43, 0.0, %v440
    %v455 = vsel %vm44, 0.0, %v442
    %v456 = vsel %vm45, 0.0, %v444
    %v457 = vsel %vm46, 0.0, %v446
    %v458 = vsel %vm47, 0.0, %v448
    %v459 = vsel %vm48, 0.0, %v450
    %v460 = vsel %vm49, 0.0, %v452
    %v461 = vsel %vm325, %v453, 0.0
    %462 = vadd.xlane.f32.xlu0 %v461
    %v463 = vpop.xlane.xlu0 %462
    %v464 = vsel %vm325, %v454, 0.0
    %465 = vadd.xlane.f32.xlu0 %v464
    %v466 = vpop.xlane.xlu0 %465
    %v467 = vsel %vm325, %v455, 0.0
    %468 = vadd.xlane.f32.xlu0 %v467
    %v469 = vpop.xlane.xlu0 %468
    %v470 = vsel %vm325, %v456, 0.0
    %471 = vadd.xlane.f32.xlu0 %v470
    %v472 = vpop.xlane.xlu0 %471
    %v473 = vsel %vm325, %v457, 0.0
    %474 = vadd.xlane.f32.xlu0 %v473
    %v475 = vpop.xlane.xlu0 %474
    %v476 = vsel %vm325, %v458, 0.0
    %477 = vadd.xlane.f32.xlu0 %v476
    %v478 = vpop.xlane.xlu0 %477
    %v479 = vsel %vm325, %v459, 0.0
    %480 = vadd.xlane.f32.xlu0 %v479
    %v481 = vpop.xlane.xlu0 %480
    %v482 = vsel %vm325, %v460, 0.0
    %483 = vadd.xlane.f32.xlu0 %v482
    %v484 = vpop.xlane.xlu0 %483
    %v485 = vadd.f32 %v463, 0.0001
    %v486 = vadd.f32 %v466, 0.0001
    %v487 = vadd.f32 %v469, 0.0001
    %v488 = vadd.f32 %v472, 0.0001
    %v489 = vadd.f32 %v475, 0.0001
    %v490 = vadd.f32 %v478, 0.0001
    %v491 = vadd.f32 %v481, 0.0001
    %v492 = vadd.f32 %v484, 0.0001
    %v493 = vrsqrt.pop %v485
    %v494 = vrsqrt.pop %v486
    %v495 = vrsqrt.pop %v487
    %v496 = vrsqrt.pop %v488
    %v497 = vrsqrt.pop %v489
    %v498 = vrsqrt.pop %v490
    %v499 = vrsqrt.pop %v491
    %v500 = vrsqrt.pop %v492
    %v502 = vsel %vm325, 1.0, 0
    %504 = vmatprep.subr.mxu0 0.0
    %505 = vmatpush1.msra.mxu0 0.0
    %506 = vmatprep.subr.mxu0 0.0
    %507 = vmatpush1.msra.mxu0 0.0
    %508 = vmatprep.subr.mxu0 0.0
    %509 = vmatpush1.msra.mxu0 0.0
    %510 = vmatprep.subr.mxu0 0.0
    %511 = vmatpush1.msra.mxu0 0.0
    %512 = vmatprep.subr.mxu0 0.0
    %513 = vmatpush1.msra.mxu0 0.0
    %514 = vmatprep.subr.mxu0 0.0
    %515 = vmatpush1.msra.mxu0 0.0
    %516 = vmatprep.subr.mxu0 0.0
    %517 = vmatpush1.msra.mxu0 0.0
    %518 = vmatprep.subr.mxu0 0.0
    %519 = vmatpush1.msra.mxu0 0.0
    %520 = vmatprep.subr.mxu0 0.0
    %521 = vmatpush1.msra.mxu0 %v460
    %522 = vmatprep.subr.mxu0 0.0
    %523 = vmatpush1.msra.mxu0 %v459
    %524 = vmatprep.subr.mxu0 0.0
    %525 = vmatpush1.msra.mxu0 %v458
    %526 = vmatprep.subr.mxu0 0.0
    %527 = vmatpush1.msra.mxu0 %v457
    %528 = vmatprep.subr.mxu0 0.0
    %529 = vmatpush1.msra.mxu0 %v456
    %530 = vmatprep.subr.mxu0 0.0
    %531 = vmatpush1.msra.mxu0 %v455
    %532 = vmatprep.subr.mxu0 0.0
    %533 = vmatpush1.msra.mxu0 %v454
    %534 = vmatprep.subr.mxu0 0.0
    %535 = vmatpush1.msra.mxu0 %v453
    %536 = vmatprep.subr.mxu0 0.0
    %537 = vmatpush2.msra.mxu0 0.0
    %538 = vmatprep.subr.mxu0 0.0
    %539 = vmatpush2.msra.mxu0 0.0
    %540 = vmatprep.subr.mxu0 0.0
    %541 = vmatpush2.msra.mxu0 0.0
    %542 = vmatprep.subr.mxu0 0.0
    %543 = vmatpush2.msra.mxu0 0.0
    %544 = vmatprep.subr.mxu0 0.0
    %545 = vmatpush2.msra.mxu0 0.0
    %546 = vmatprep.subr.mxu0 0.0
    %547 = vmatpush2.msra.mxu0 0.0
    %548 = vmatprep.subr.mxu0 0.0
    %549 = vmatpush2.msra.mxu0 0.0
    %550 = vmatprep.subr.mxu0 0.0
    %551 = vmatpush2.msra.mxu0 0.0
    %552 = vmatprep.subr.mxu0 0.0
    %553 = vmatpush2.msra.mxu0 0.0
    %554 = vmatprep.subr.mxu0 0.0
    %555 = vmatpush2.msra.mxu0 0.0
    %556 = vmatprep.subr.mxu0 0.0
    %557 = vmatpush2.msra.mxu0 0.0
    %558 = vmatprep.subr.mxu0 0.0
    %559 = vmatpush2.msra.mxu0 0.0
    %560 = vmatprep.subr.mxu0 0.0
    %561 = vmatpush2.msra.mxu0 0.0
    %562 = vmatprep.subr.mxu0 0.0
    %563 = vmatpush2.msra.mxu0 0.0
    %564 = vmatprep.subr.mxu0 0.0
    %565 = vmatpush2.msra.mxu0 0.0
    %566 = vmatprep.subr.mxu0 0.0
    %567 = vmatpush2.msra.mxu0 0.0
    %568 = vmatprep.mubr.f32.mxu0 0.0
    %569 = vmatmul.mubr.f32.gmra.mxu0 %v502
    %v570 = vpop.f32.mrf.mxu0
    %v571 = vadd.f32 0.0001, %v570
    %v572 = vpop.f32.mrf.mxu0
    %573 = vdwg.mxu0
    %v574 = vrsqrt.pop %v571
    %v575 = vmul.f32 %v493, 0.5
    %v576 = vmul.f32 %v494, 0.5
    %v577 = vmul.f32 %v495, 0.5
    %v578 = vmul.f32 %v496, 0.5
    %v579 = vmul.f32 %v497, 0.5
    %v580 = vmul.f32 %v498, 0.5
    %v581 = vmul.f32 %v499, 0.5
    %v582 = vmul.f32 %v500, 0.5
    %v583 = vmul.f32 %v453, %v575
    %v584 = vmul.f32 %v454, %v576
    %v585 = vmul.f32 %v455, %v577
    %v586 = vmul.f32 %v456, %v578
    %v587 = vmul.f32 %v457, %v579
    %v588 = vmul.f32 %v458, %v580
    %v589 = vmul.f32 %v459, %v581
    %v590 = vmul.f32 %v460, %v582
    %v591 = vlaneseq
    %v592 = vshrl.u32 %v591, 7
    %v593 = vsub.s32 0, %v592
    %v594 = vrot.slane %v574, %v593
    %v595 = vmul.f32 %v583, %v594
    %v596 = vmul.f32 %v584, %v594
    %v597 = vmul.f32 %v585, %v594
    %v598 = vmul.f32 %v586, %v594
    %v599 = vmul.f32 %v587, %v594
    %v600 = vmul.f32 %v588, %v594
    %v601 = vmul.f32 %v589, %v594
    %v602 = vmul.f32 %v590, %v594
    %v604 = vsel %vm325, %v595, 0
    %v607 = vsel %vm325, %v596, 0
    %v610 = vsel %vm325, %v597, 0
    %v613 = vsel %vm325, %v598, 0
    %v616 = vsel %vm325, %v599, 0
    %v619 = vsel %vm325, %v600, 0
    %v622 = vsel %vm325, %v601, 0
    %v625 = vsel %vm325, %v602, 0
    %627 = vmatprep.subr.mxu0 0.0
    %628 = vmatpush1.msra.mxu0 0.0
    %629 = vmatprep.subr.mxu0 0.0
    %630 = vmatpush1.msra.mxu0 0.0
    %631 = vmatprep.subr.mxu0 0.0
    %632 = vmatpush1.msra.mxu0 0.0
    %633 = vmatprep.subr.mxu0 0.0
    %634 = vmatpush1.msra.mxu0 0.0
    %635 = vmatprep.subr.mxu0 0.0
    %636 = vmatpush1.msra.mxu0 0.0
    %637 = vmatprep.subr.mxu0 0.0
    %638 = vmatpush1.msra.mxu0 0.0
    %639 = vmatprep.subr.mxu0 0.0
    %640 = vmatpush1.msra.mxu0 0.0
    %641 = vmatprep.subr.mxu0 0.0
    %642 = vmatpush1.msra.mxu0 0.0
    %643 = vmatprep.subr.mxu0 0.0
    %644 = vmatpush1.msra.mxu0 %v30
    %645 = vmatprep.subr.mxu0 0.0
    %646 = vmatpush1.msra.mxu0 %v29
    %647 = vmatprep.subr.mxu0 0.0
    %648 = vmatpush1.msra.mxu0 %v28
    %649 = vmatprep.subr.mxu0 0.0
    %650 = vmatpush1.msra.mxu0 %v27
    %651 = vmatprep.subr.mxu0 0.0
    %652 = vmatpush1.msra.mxu0 %v26
    %653 = vmatprep.subr.mxu0 0.0
    %654 = vmatpush1.msra.mxu0 %v25
    %655 = vmatprep.subr.mxu0 0.0
    %656 = vmatpush1.msra.mxu0 %v24
    %657 = vmatprep.subr.mxu0 0.0
    %658 = vmatpush1.msra.mxu0 %v23
    %659 = vmatprep.subr.mxu0 0.0
    %660 = vmatpush2.msra.mxu0 0.0
    %661 = vmatprep.subr.mxu0 0.0
    %662 = vmatpush2.msra.mxu0 0.0
    %663 = vmatprep.subr.mxu0 0.0
    %664 = vmatpush2.msra.mxu0 0.0
    %665 = vmatprep.subr.mxu0 0.0
    %666 = vmatpush2.msra.mxu0 0.0
    %667 = vmatprep.subr.mxu0 0.0
    %668 = vmatpush2.msra.mxu0 0.0
    %669 = vmatprep.subr.mxu0 0.0
    %670 = vmatpush2.msra.mxu0 0.0
    %671 = vmatprep.subr.mxu0 0.0
    %672 = vmatpush2.msra.mxu0 0.0
    %673 = vmatprep.subr.mxu0 0.0
    %674 = vmatpush2.msra.mxu0 0.0
    %675 = vmatprep.subr.mxu0 0.0
    %676 = vmatpush2.msra.mxu0 0.0
    %677 = vmatprep.subr.mxu0 0.0
    %678 = vmatpush2.msra.mxu0 0.0
    %679 = vmatprep.subr.mxu0 0.0
    %680 = vmatpush2.msra.mxu0 0.0
    %681 = vmatprep.subr.mxu0 0.0
    %682 = vmatpush2.msra.mxu0 0.0
    %683 = vmatprep.subr.mxu0 0.0
    %684 = vmatpush2.msra.mxu0 0.0
    %685 = vmatprep.subr.mxu0 0.0
    %686 = vmatpush2.msra.mxu0 0.0
    %687 = vmatprep.subr.mxu0 0.0
    %688 = vmatpush2.msra.mxu0 0.0
    %689 = vmatprep.subr.mxu0 0.0
    %690 = vmatpush2.msra.mxu0 0.0
    %691 = vmatprep.mubr.f32.mxu0 0.0
    %692 = vmatmul.mubr.f32.gmra.mxu0 %v604
    %v693 = vpop.f32.mrf.mxu0
    %v694 = vadd.f32 0.0, %v693
    %v695 = vpop.f32.mrf.mxu0
    %696 = vmatprep.mubr.f32.mxu0 0.0
    %697 = vmatmul.mubr.f32.gmra.mxu0 %v607
    %v698 = vpop.f32.mrf.mxu0
    %v699 = vadd.f32 0.0, %v698
    %v700 = vpop.f32.mrf.mxu0
    %701 = vmatprep.mubr.f32.mxu0 0.0
    %702 = vmatmul.mubr.f32.gmra.mxu0 %v610
    %v703 = vpop.f32.mrf.mxu0
    %v704 = vadd.f32 0.0, %v703
    %v705 = vpop.f32.mrf.mxu0
    %706 = vmatprep.mubr.f32.mxu0 0.0
    %707 = vmatmul.mubr.f32.gmra.mxu0 %v613
    %v708 = vpop.f32.mrf.mxu0
    %v709 = vadd.f32 0.0, %v708
    %v710 = vpop.f32.mrf.mxu0
    %711 = vmatprep.mubr.f32.mxu0 0.0
    %712 = vmatmul.mubr.f32.gmra.mxu0 %v616
    %v713 = vpop.f32.mrf.mxu0
    %v714 = vadd.f32 0.0, %v713
    %v715 = vpop.f32.mrf.mxu0
    %716 = vmatprep.mubr.f32.mxu0 0.0
    %717 = vmatmul.mubr.f32.gmra.mxu0 %v619
    %v718 = vpop.f32.mrf.mxu0
    %v719 = vadd.f32 0.0, %v718
    %v720 = vpop.f32.mrf.mxu0
    %721 = vmatprep.mubr.f32.mxu0 0.0
    %722 = vmatmul.mubr.f32.gmra.mxu0 %v622
    %v723 = vpop.f32.mrf.mxu0
    %v724 = vadd.f32 0.0, %v723
    %v725 = vpop.f32.mrf.mxu0
    %726 = vmatprep.mubr.f32.mxu0 0.0
    %727 = vmatmul.mubr.f32.gmra.mxu0 %v625
    %v728 = vpop.f32.mrf.mxu0
    %v729 = vadd.f32 0.0, %v728
    %v730 = vpop.f32.mrf.mxu0
    %731 = vdwg.mxu0
    %v732 = vadd.f32 %v23, %v694
    %v733 = vadd.f32 %v24, %v699
    %v734 = vadd.f32 %v25, %v704
    %v735 = vadd.f32 %v26, %v709
    %v736 = vadd.f32 %v27, %v714
    %v737 = vadd.f32 %v28, %v719
    %v738 = vadd.f32 %v29, %v724
    %v739 = vadd.f32 %v30, %v729
    %740 = vmatprep.subr.mxu0 0.0
    %741 = vmatpush1.msra.mxu0 0.0
    %742 = vmatprep.subr.mxu0 0.0
    %743 = vmatpush1.msra.mxu0 0.0
    %744 = vmatprep.subr.mxu0 0.0
    %745 = vmatpush1.msra.mxu0 0.0
    %746 = vmatprep.subr.mxu0 0.0
    %747 = vmatpush1.msra.mxu0 0.0
    %748 = vmatprep.subr.mxu0 0.0
    %749 = vmatpush1.msra.mxu0 0.0
    %750 = vmatprep.subr.mxu0 0.0
    %751 = vmatpush1.msra.mxu0 0.0
    %752 = vmatprep.subr.mxu0 0.0
    %753 = vmatpush1.msra.mxu0 0.0
    %754 = vmatprep.subr.mxu0 0.0
    %755 = vmatpush1.msra.mxu0 0.0
    %756 = vmatprep.subr.mxu0 0.0
    %757 = vmatpush1.msra.mxu0 %v602
    %758 = vmatprep.subr.mxu0 0.0
    %759 = vmatpush1.msra.mxu0 %v601
    %760 = vmatprep.subr.mxu0 0.0
    %761 = vmatpush1.msra.mxu0 %v600
    %762 = vmatprep.subr.mxu0 0.0
    %763 = vmatpush1.msra.mxu0 %v599
    %764 = vmatprep.subr.mxu0 0.0
    %765 = vmatpush1.msra.mxu0 %v598
    %766 = vmatprep.subr.mxu0 0.0
    %767 = vmatpush1.msra.mxu0 %v597
    %768 = vmatprep.subr.mxu0 0.0
    %769 = vmatpush1.msra.mxu0 %v596
    %770 = vmatprep.subr.mxu0 0.0
    %771 = vmatpush1.msra.mxu0 %v595
    %772 = vmatprep.subr.mxu0 0.0
    %773 = vmatpush2.msra.mxu0 0.0
    %774 = vmatprep.subr.mxu0 0.0
    %775 = vmatpush2.msra.mxu0 0.0
    %776 = vmatprep.subr.mxu0 0.0
    %777 = vmatpush2.msra.mxu0 0.0
    %778 = vmatprep.subr.mxu0 0.0
    %779 = vmatpush2.msra.mxu0 0.0
    %780 = vmatprep.subr.mxu0 0.0
    %781 = vmatpush2.msra.mxu0 0.0
    %782 = vmatprep.subr.mxu0 0.0
    %783 = vmatpush2.msra.mxu0 0.0
    %784 = vmatprep.subr.mxu0 0.0
    %785 = vmatpush2.msra.mxu0 0.0
    %786 = vmatprep.subr.mxu0 0.0
    %787 = vmatpush2.msra.mxu0 0.0
    %788 = vmatprep.subr.mxu0 0.0
    %789 = vmatpush2.msra.mxu0 0.0
    %790 = vmatprep.subr.mxu0 0.0
    %791 = vmatpush2.msra.mxu0 0.0
    %792 = vmatprep.subr.mxu0 0.0
    %793 = vmatpush2.msra.mxu0 0.0
    %794 = vmatprep.subr.mxu0 0.0
    %795 = vmatpush2.msra.mxu0 0.0
    %796 = vmatprep.subr.mxu0 0.0
    %797 = vmatpush2.msra.mxu0 0.0
    %798 = vmatprep.subr.mxu0 0.0
    %799 = vmatpush2.msra.mxu0 0.0
    %800 = vmatprep.subr.mxu0 0.0
    %801 = vmatpush2.msra.mxu0 0.0
    %802 = vmatprep.subr.mxu0 0.0
    %803 = vmatpush2.msra.mxu0 0.0
    %804 = vmatprep.mubr.f32.mxu0 0.0
    %805 = vmatmul.mubr.f32.gmra.mxu0 %v604
    %v806 = vpop.f32.mrf.mxu0
    %v807 = vadd.f32 0.0, %v806
    %v808 = vpop.f32.mrf.mxu0
    %809 = vmatprep.mubr.f32.mxu0 0.0
    %810 = vmatmul.mubr.f32.gmra.mxu0 %v607
    %v811 = vpop.f32.mrf.mxu0
    %v812 = vadd.f32 0.0, %v811
    %v813 = vpop.f32.mrf.mxu0
    %814 = vmatprep.mubr.f32.mxu0 0.0
    %815 = vmatmul.mubr.f32.gmra.mxu0 %v610
    %v816 = vpop.f32.mrf.mxu0
    %v817 = vadd.f32 0.0, %v816
    %v818 = vpop.f32.mrf.mxu0
    %819 = vmatprep.mubr.f32.mxu0 0.0
    %820 = vmatmul.mubr.f32.gmra.mxu0 %v613
    %v821 = vpop.f32.mrf.mxu0
    %v822 = vadd.f32 0.0, %v821
    %v823 = vpop.f32.mrf.mxu0
    %824 = vmatprep.mubr.f32.mxu0 0.0
    %825 = vmatmul.mubr.f32.gmra.mxu0 %v616
    %v826 = vpop.f32.mrf.mxu0
    %v827 = vadd.f32 0.0, %v826
    %v828 = vpop.f32.mrf.mxu0
    %829 = vmatprep.mubr.f32.mxu0 0.0
    %830 = vmatmul.mubr.f32.gmra.mxu0 %v619
    %v831 = vpop.f32.mrf.mxu0
    %v832 = vadd.f32 0.0, %v831
    %v833 = vpop.f32.mrf.mxu0
    %834 = vmatprep.mubr.f32.mxu0 0.0
    %835 = vmatmul.mubr.f32.gmra.mxu0 %v622
    %v836 = vpop.f32.mrf.mxu0
    %v837 = vadd.f32 0.0, %v836
    %v838 = vpop.f32.mrf.mxu0
    %839 = vmatprep.mubr.f32.mxu0 0.0
    %840 = vmatmul.mubr.f32.gmra.mxu0 %v625
    %v841 = vpop.f32.mrf.mxu0
    %v842 = vadd.f32 0.0, %v841
    %v843 = vpop.f32.mrf.mxu0
    %844 = vdwg.mxu0
    %v846 = vsel %vm325, %v807, 0
    %v849 = vsel %vm325, %v812, 0
    %v852 = vsel %vm325, %v817, 0
    %v855 = vsel %vm325, %v822, 0
    %v858 = vsel %vm325, %v827, 0
    %v861 = vsel %vm325, %v832, 0
    %v864 = vsel %vm325, %v837, 0
    %v867 = vsel %vm325, %v842, 0
    %869 = vmatprep.subr.mxu0 0.0
    %870 = vmatpush1.msra.mxu0 0.0
    %871 = vmatprep.subr.mxu0 0.0
    %872 = vmatpush1.msra.mxu0 0.0
    %873 = vmatprep.subr.mxu0 0.0
    %874 = vmatpush1.msra.mxu0 0.0
    %875 = vmatprep.subr.mxu0 0.0
    %876 = vmatpush1.msra.mxu0 0.0
    %877 = vmatprep.subr.mxu0 0.0
    %878 = vmatpush1.msra.mxu0 0.0
    %879 = vmatprep.subr.mxu0 0.0
    %880 = vmatpush1.msra.mxu0 0.0
    %881 = vmatprep.subr.mxu0 0.0
    %882 = vmatpush1.msra.mxu0 0.0
    %883 = vmatprep.subr.mxu0 0.0
    %884 = vmatpush1.msra.mxu0 0.0
    %885 = vmatprep.subr.mxu0 0.0
    %886 = vmatpush1.msra.mxu0 %v739
    %887 = vmatprep.subr.mxu0 0.0
    %888 = vmatpush1.msra.mxu0 %v738
    %889 = vmatprep.subr.mxu0 0.0
    %890 = vmatpush1.msra.mxu0 %v737
    %891 = vmatprep.subr.mxu0 0.0
    %892 = vmatpush1.msra.mxu0 %v736
    %893 = vmatprep.subr.mxu0 0.0
    %894 = vmatpush1.msra.mxu0 %v735
    %895 = vmatprep.subr.mxu0 0.0
    %896 = vmatpush1.msra.mxu0 %v734
    %897 = vmatprep.subr.mxu0 0.0
    %898 = vmatpush1.msra.mxu0 %v733
    %899 = vmatprep.subr.mxu0 0.0
    %900 = vmatpush1.msra.mxu0 %v732
    %901 = vmatprep.subr.mxu0 0.0
    %902 = vmatpush2.msra.mxu0 0.0
    %903 = vmatprep.subr.mxu0 0.0
    %904 = vmatpush2.msra.mxu0 0.0
    %905 = vmatprep.subr.mxu0 0.0
    %906 = vmatpush2.msra.mxu0 0.0
    %907 = vmatprep.subr.mxu0 0.0
    %908 = vmatpush2.msra.mxu0 0.0
    %909 = vmatprep.subr.mxu0 0.0
    %910 = vmatpush2.msra.mxu0 0.0
    %911 = vmatprep.subr.mxu0 0.0
    %912 = vmatpush2.msra.mxu0 0.0
    %913 = vmatprep.subr.mxu0 0.0
    %914 = vmatpush2.msra.mxu0 0.0
    %915 = vmatprep.subr.mxu0 0.0
    %916 = vmatpush2.msra.mxu0 0.0
    %917 = vmatprep.subr.mxu0 0.0
    %918 = vmatpush2.msra.mxu0 0.0
    %919 = vmatprep.subr.mxu0 0.0
    %920 = vmatpush2.msra.mxu0 0.0
    %921 = vmatprep.subr.mxu0 0.0
    %922 = vmatpush2.msra.mxu0 0.0
    %923 = vmatprep.subr.mxu0 0.0
    %924 = vmatpush2.msra.mxu0 0.0
    %925 = vmatprep.subr.mxu0 0.0
    %926 = vmatpush2.msra.mxu0 0.0
    %927 = vmatprep.subr.mxu0 0.0
    %928 = vmatpush2.msra.mxu0 0.0
    %929 = vmatprep.subr.mxu0 0.0
    %930 = vmatpush2.msra.mxu0 0.0
    %931 = vmatprep.subr.mxu0 0.0
    %932 = vmatpush2.msra.mxu0 0.0
    %933 = vmatprep.mubr.f32.mxu0 0.0
    %934 = vmatmul.mubr.f32.gmra.mxu0 %v846
    %v935 = vpop.f32.mrf.mxu0
    %v936 = vadd.f32 0.0, %v935
    %v937 = vpop.f32.mrf.mxu0
    %938 = vmatprep.mubr.f32.mxu0 0.0
    %939 = vmatmul.mubr.f32.gmra.mxu0 %v849
    %v940 = vpop.f32.mrf.mxu0
    %v941 = vadd.f32 0.0, %v940
    %v942 = vpop.f32.mrf.mxu0
    %943 = vmatprep.mubr.f32.mxu0 0.0
    %944 = vmatmul.mubr.f32.gmra.mxu0 %v852
    %v945 = vpop.f32.mrf.mxu0
    %v946 = vadd.f32 0.0, %v945
    %v947 = vpop.f32.mrf.mxu0
    %948 = vmatprep.mubr.f32.mxu0 0.0
    %949 = vmatmul.mubr.f32.gmra.mxu0 %v855
    %v950 = vpop.f32.mrf.mxu0
    %v951 = vadd.f32 0.0, %v950
    %v952 = vpop.f32.mrf.mxu0
    %953 = vmatprep.mubr.f32.mxu0 0.0
    %954 = vmatmul.mubr.f32.gmra.mxu0 %v858
    %v955 = vpop.f32.mrf.mxu0
    %v956 = vadd.f32 0.0, %v955
    %v957 = vpop.f32.mrf.mxu0
    %958 = vmatprep.mubr.f32.mxu0 0.0
    %959 = vmatmul.mubr.f32.gmra.mxu0 %v861
    %v960 = vpop.f32.mrf.mxu0
    %v961 = vadd.f32 0.0, %v960
    %v962 = vpop.f32.mrf.mxu0
    %963 = vmatprep.mubr.f32.mxu0 0.0
    %964 = vmatmul.mubr.f32.gmra.mxu0 %v864
    %v965 = vpop.f32.mrf.mxu0
    %v966 = vadd.f32 0.0, %v965
    %v967 = vpop.f32.mrf.mxu0
    %968 = vmatprep.mubr.f32.mxu0 0.0
    %969 = vmatmul.mubr.f32.gmra.mxu0 %v867
    %v970 = vpop.f32.mrf.mxu0
    %v971 = vadd.f32 0.0, %v970
    %v972 = vpop.f32.mrf.mxu0
    %973 = vdwg.mxu0
    %v974 = vadd.f32 %v732, %v936
    %v975 = vadd.f32 %v733, %v941
    %v976 = vadd.f32 %v734, %v946
    %v977 = vadd.f32 %v735, %v951
    %v978 = vadd.f32 %v736, %v956
    %v979 = vadd.f32 %v737, %v961
    %v980 = vadd.f32 %v738, %v966
    %v981 = vadd.f32 %v739, %v971
    %982 = vmatprep.subr.mxu0 0.0
    %983 = vmatpush1.msra.mxu0 0.0
    %984 = vmatprep.subr.mxu0 0.0
    %985 = vmatpush1.msra.mxu0 0.0
    %986 = vmatprep.subr.mxu0 0.0
    %987 = vmatpush1.msra.mxu0 0.0
    %988 = vmatprep.subr.mxu0 0.0
    %989 = vmatpush1.msra.mxu0 0.0
    %990 = vmatprep.subr.mxu0 0.0
    %991 = vmatpush1.msra.mxu0 0.0
    %992 = vmatprep.subr.mxu0 0.0
    %993 = vmatpush1.msra.mxu0 0.0
    %994 = vmatprep.subr.mxu0 0.0
    %995 = vmatpush1.msra.mxu0 0.0
    %996 = vmatprep.subr.mxu0 0.0
    %997 = vmatpush1.msra.mxu0 0.0
    %998 = vmatprep.subr.mxu0 0.0
    %999 = vmatpush1.msra.mxu0 %v842
    %1000 = vmatprep.subr.mxu0 0.0
    %1001 = vmatpush1.msra.mxu0 %v837
    %1002 = vmatprep.subr.mxu0 0.0
    %1003 = vmatpush1.msra.mxu0 %v832
    %1004 = vmatprep.subr.mxu0 0.0
    %1005 = vmatpush1.msra.mxu0 %v827
    %1006 = vmatprep.subr.mxu0 0.0
    %1007 = vmatpush1.msra.mxu0 %v822
    %1008 = vmatprep.subr.mxu0 0.0
    %1009 = vmatpush1.msra.mxu0 %v817
    %1010 = vmatprep.subr.mxu0 0.0
    %1011 = vmatpush1.msra.mxu0 %v812
    %1012 = vmatprep.subr.mxu0 0.0
    %1013 = vmatpush1.msra.mxu0 %v807
    %1014 = vmatprep.subr.mxu0 0.0
    %1015 = vmatpush2.msra.mxu0 0.0
    %1016 = vmatprep.subr.mxu0 0.0
    %1017 = vmatpush2.msra.mxu0 0.0
    %1018 = vmatprep.subr.mxu0 0.0
    %1019 = vmatpush2.msra.mxu0 0.0
    %1020 = vmatprep.subr.mxu0 0.0
    %1021 = vmatpush2.msra.mxu0 0.0
    %1022 = vmatprep.subr.mxu0 0.0
    %1023 = vmatpush2.msra.mxu0 0.0
    %1024 = vmatprep.subr.mxu0 0.0
    %1025 = vmatpush2.msra.mxu0 0.0
    %1026 = vmatprep.subr.mxu0 0.0
    %1027 = vmatpush2.msra.mxu0 0.0
    %1028 = vmatprep.subr.mxu0 0.0
    %1029 = vmatpush2.msra.mxu0 0.0
    %1030 = vmatprep.subr.mxu0 0.0
    %1031 = vmatpush2.msra.mxu0 0.0
    %1032 = vmatprep.subr.mxu0 0.0
    %1033 = vmatpush2.msra.mxu0 0.0
    %1034 = vmatprep.subr.mxu0 0.0
    %1035 = vmatpush2.msra.mxu0 0.0
    %1036 = vmatprep.subr.mxu0 0.0
    %1037 = vmatpush2.msra.mxu0 0.0
    %1038 = vmatprep.subr.mxu0 0.0
    %1039 = vmatpush2.msra.mxu0 0.0
    %1040 = vmatprep.subr.mxu0 0.0
    %1041 = vmatpush2.msra.mxu0 0.0
    %1042 = vmatprep.subr.mxu0 0.0
    %1043 = vmatpush2.msra.mxu0 0.0
    %1044 = vmatprep.subr.mxu0 0.0
    %1045 = vmatpush2.msra.mxu0 0.0
    %1046 = vmatprep.mubr.f32.mxu0 0.0
    %1047 = vmatmul.mubr.f32.gmra.mxu0 %v846
    %v1048 = vpop.f32.mrf.mxu0
    %v1049 = vadd.f32 0.0, %v1048
    %v1050 = vpop.f32.mrf.mxu0
    %1051 = vmatprep.mubr.f32.mxu0 0.0
    %1052 = vmatmul.mubr.f32.gmra.mxu0 %v849
    %v1053 = vpop.f32.mrf.mxu0
    %v1054 = vadd.f32 0.0, %v1053
    %v1055 = vpop.f32.mrf.mxu0
    %1056 = vmatprep.mubr.f32.mxu0 0.0
    %1057 = vmatmul.mubr.f32.gmra.mxu0 %v852
    %v1058 = vpop.f32.mrf.mxu0
    %v1059 = vadd.f32 0.0, %v1058
    %v1060 = vpop.f32.mrf.mxu0
    %1061 = vmatprep.mubr.f32.mxu0 0.0
    %1062 = vmatmul.mubr.f32.gmra.mxu0 %v855
    %v1063 = vpop.f32.mrf.mxu0
    %v1064 = vadd.f32 0.0, %v1063
    %v1065 = vpop.f32.mrf.mxu0
    %1066 = vmatprep.mubr.f32.mxu0 0.0
    %1067 = vmatmul.mubr.f32.gmra.mxu0 %v858
    %v1068 = vpop.f32.mrf.mxu0
    %v1069 = vadd.f32 0.0, %v1068
    %v1070 = vpop.f32.mrf.mxu0
    %1071 = vmatprep.mubr.f32.mxu0 0.0
    %1072 = vmatmul.mubr.f32.gmra.mxu0 %v861
    %v1073 = vpop.f32.mrf.mxu0
    %v1074 = vadd.f32 0.0, %v1073
    %v1075 = vpop.f32.mrf.mxu0
    %1076 = vmatprep.mubr.f32.mxu0 0.0
    %1077 = vmatmul.mubr.f32.gmra.mxu0 %v864
    %v1078 = vpop.f32.mrf.mxu0
    %v1079 = vadd.f32 0.0, %v1078
    %v1080 = vpop.f32.mrf.mxu0
    %1081 = vmatprep.mubr.f32.mxu0 0.0
    %1082 = vmatmul.mubr.f32.gmra.mxu0 %v867
    %v1083 = vpop.f32.mrf.mxu0
    %v1084 = vadd.f32 0.0, %v1083
    %v1085 = vpop.f32.mrf.mxu0
    %1086 = vdwg.mxu0
    %v1088 = vsel %vm325, %v1049, 0
    %v1091 = vsel %vm325, %v1054, 0
    %v1094 = vsel %vm325, %v1059, 0
    %v1097 = vsel %vm325, %v1064, 0
    %v1100 = vsel %vm325, %v1069, 0
    %v1103 = vsel %vm325, %v1074, 0
    %v1106 = vsel %vm325, %v1079, 0
    %v1109 = vsel %vm325, %v1084, 0
    %1111 = vmatprep.subr.mxu0 0.0
    %1112 = vmatpush1.msra.mxu0 0.0
    %1113 = vmatprep.subr.mxu0 0.0
    %1114 = vmatpush1.msra.mxu0 0.0
    %1115 = vmatprep.subr.mxu0 0.0
    %1116 = vmatpush1.msra.mxu0 0.0
    %1117 = vmatprep.subr.mxu0 0.0
    %1118 = vmatpush1.msra.mxu0 0.0
    %1119 = vmatprep.subr.mxu0 0.0
    %1120 = vmatpush1.msra.mxu0 0.0
    %1121 = vmatprep.subr.mxu0 0.0
    %1122 = vmatpush1.msra.mxu0 0.0
    %1123 = vmatprep.subr.mxu0 0.0
    %1124 = vmatpush1.msra.mxu0 0.0
    %1125 = vmatprep.subr.mxu0 0.0
    %1126 = vmatpush1.msra.mxu0 0.0
    %1127 = vmatprep.subr.mxu0 0.0
    %1128 = vmatpush1.msra.mxu0 %v981
    %1129 = vmatprep.subr.mxu0 0.0
    %1130 = vmatpush1.msra.mxu0 %v980
    %1131 = vmatprep.subr.mxu0 0.0
    %1132 = vmatpush1.msra.mxu0 %v979
    %1133 = vmatprep.subr.mxu0 0.0
    %1134 = vmatpush1.msra.mxu0 %v978
    %1135 = vmatprep.subr.mxu0 0.0
    %1136 = vmatpush1.msra.mxu0 %v977
    %1137 = vmatprep.subr.mxu0 0.0
    %1138 = vmatpush1.msra.mxu0 %v976
    %1139 = vmatprep.subr.mxu0 0.0
    %1140 = vmatpush1.msra.mxu0 %v975
    %1141 = vmatprep.subr.mxu0 0.0
    %1142 = vmatpush1.msra.mxu0 %v974
    %1143 = vmatprep.subr.mxu0 0.0
    %1144 = vmatpush2.msra.mxu0 0.0
    %1145 = vmatprep.subr.mxu0 0.0
    %1146 = vmatpush2.msra.mxu0 0.0
    %1147 = vmatprep.subr.mxu0 0.0
    %1148 = vmatpush2.msra.mxu0 0.0
    %1149 = vmatprep.subr.mxu0 0.0
    %1150 = vmatpush2.msra.mxu0 0.0
    %1151 = vmatprep.subr.mxu0 0.0
    %1152 = vmatpush2.msra.mxu0 0.0
    %1153 = vmatprep.subr.mxu0 0.0
    %1154 = vmatpush2.msra.mxu0 0.0
    %1155 = vmatprep.subr.mxu0 0.0
    %1156 = vmatpush2.msra.mxu0 0.0
    %1157 = vmatprep.subr.mxu0 0.0
    %1158 = vmatpush2.msra.mxu0 0.0
    %1159 = vmatprep.subr.mxu0 0.0
    %1160 = vmatpush2.msra.mxu0 0.0
    %1161 = vmatprep.subr.mxu0 0.0
    %1162 = vmatpush2.msra.mxu0 0.0
    %1163 = vmatprep.subr.mxu0 0.0
    %1164 = vmatpush2.msra.mxu0 0.0
    %1165 = vmatprep.subr.mxu0 0.0
    %1166 = vmatpush2.msra.mxu0 0.0
    %1167 = vmatprep.subr.mxu0 0.0
    %1168 = vmatpush2.msra.mxu0 0.0
    %1169 = vmatprep.subr.mxu0 0.0
    %1170 = vmatpush2.msra.mxu0 0.0
    %1171 = vmatprep.subr.mxu0 0.0
    %1172 = vmatpush2.msra.mxu0 0.0
    %1173 = vmatprep.subr.mxu0 0.0
    %1174 = vmatpush2.msra.mxu0 0.0
    %1175 = vmatprep.mubr.f32.mxu0 0.0
    %1176 = vmatmul.mubr.f32.gmra.mxu0 %v1088
    %v1177 = vpop.f32.mrf.mxu0
    %v1178 = vadd.f32 0.0, %v1177
    %v1179 = vpop.f32.mrf.mxu0
    %1180 = vmatprep.mubr.f32.mxu0 0.0
    %1181 = vmatmul.mubr.f32.gmra.mxu0 %v1091
    %v1182 = vpop.f32.mrf.mxu0
    %v1183 = vadd.f32 0.0, %v1182
    %v1184 = vpop.f32.mrf.mxu0
    %1185 = vmatprep.mubr.f32.mxu0 0.0
    %1186 = vmatmul.mubr.f32.gmra.mxu0 %v1094
    %v1187 = vpop.f32.mrf.mxu0
    %v1188 = vadd.f32 0.0, %v1187
    %v1189 = vpop.f32.mrf.mxu0
    %1190 = vmatprep.mubr.f32.mxu0 0.0
    %1191 = vmatmul.mubr.f32.gmra.mxu0 %v1097
    %v1192 = vpop.f32.mrf.mxu0
    %v1193 = vadd.f32 0.0, %v1192
    %v1194 = vpop.f32.mrf.mxu0
    %1195 = vmatprep.mubr.f32.mxu0 0.0
    %1196 = vmatmul.mubr.f32.gmra.mxu0 %v1100
    %v1197 = vpop.f32.mrf.mxu0
    %v1198 = vadd.f32 0.0, %v1197
    %v1199 = vpop.f32.mrf.mxu0
    %1200 = vmatprep.mubr.f32.mxu0 0.0
    %1201 = vmatmul.mubr.f32.gmra.mxu0 %v1103
    %v1202 = vpop.f32.mrf.mxu0
    %v1203 = vadd.f32 0.0, %v1202
    %v1204 = vpop.f32.mrf.mxu0
    %1205 = vmatprep.mubr.f32.mxu0 0.0
    %1206 = vmatmul.mubr.f32.gmra.mxu0 %v1106
    %v1207 = vpop.f32.mrf.mxu0
    %v1208 = vadd.f32 0.0, %v1207
    %v1209 = vpop.f32.mrf.mxu0
    %1210 = vmatprep.mubr.f32.mxu0 0.0
    %1211 = vmatmul.mubr.f32.gmra.mxu0 %v1109
    %v1212 = vpop.f32.mrf.mxu0
    %v1213 = vadd.f32 0.0, %v1212
    %v1214 = vpop.f32.mrf.mxu0
    %1215 = vdwg.mxu0
    %v1216 = vadd.f32 %v974, %v1178
    %v1217 = vadd.f32 %v975, %v1183
    %v1218 = vadd.f32 %v976, %v1188
    %v1219 = vadd.f32 %v977, %v1193
    %v1220 = vadd.f32 %v978, %v1198
    %v1221 = vadd.f32 %v979, %v1203
    %v1222 = vadd.f32 %v980, %v1208
    %v1223 = vadd.f32 %v981, %v1213
    %1224 = vmatprep.subr.mxu0 0.0
    %1225 = vmatpush1.msra.mxu0 0.0
    %1226 = vmatprep.subr.mxu0 0.0
    %1227 = vmatpush1.msra.mxu0 0.0
    %1228 = vmatprep.subr.mxu0 0.0
    %1229 = vmatpush1.msra.mxu0 0.0
    %1230 = vmatprep.subr.mxu0 0.0
    %1231 = vmatpush1.msra.mxu0 0.0
    %1232 = vmatprep.subr.mxu0 0.0
    %1233 = vmatpush1.msra.mxu0 0.0
    %1234 = vmatprep.subr.mxu0 0.0
    %1235 = vmatpush1.msra.mxu0 0.0
    %1236 = vmatprep.subr.mxu0 0.0
    %1237 = vmatpush1.msra.mxu0 0.0
    %1238 = vmatprep.subr.mxu0 0.0
    %1239 = vmatpush1.msra.mxu0 0.0
    %1240 = vmatprep.subr.mxu0 0.0
    %1241 = vmatpush1.msra.mxu0 %v1084
    %1242 = vmatprep.subr.mxu0 0.0
    %1243 = vmatpush1.msra.mxu0 %v1079
    %1244 = vmatprep.subr.mxu0 0.0
    %1245 = vmatpush1.msra.mxu0 %v1074
    %1246 = vmatprep.subr.mxu0 0.0
    %1247 = vmatpush1.msra.mxu0 %v1069
    %1248 = vmatprep.subr.mxu0 0.0
    %1249 = vmatpush1.msra.mxu0 %v1064
    %1250 = vmatprep.subr.mxu0 0.0
    %1251 = vmatpush1.msra.mxu0 %v1059
    %1252 = vmatprep.subr.mxu0 0.0
    %1253 = vmatpush1.msra.mxu0 %v1054
    %1254 = vmatprep.subr.mxu0 0.0
    %1255 = vmatpush1.msra.mxu0 %v1049
    %1256 = vmatprep.subr.mxu0 0.0
    %1257 = vmatpush2.msra.mxu0 0.0
    %1258 = vmatprep.subr.mxu0 0.0
    %1259 = vmatpush2.msra.mxu0 0.0
    %1260 = vmatprep.subr.mxu0 0.0
    %1261 = vmatpush2.msra.mxu0 0.0
    %1262 = vmatprep.subr.mxu0 0.0
    %1263 = vmatpush2.msra.mxu0 0.0
    %1264 = vmatprep.subr.mxu0 0.0
    %1265 = vmatpush2.msra.mxu0 0.0
    %1266 = vmatprep.subr.mxu0 0.0
    %1267 = vmatpush2.msra.mxu0 0.0
    %1268 = vmatprep.subr.mxu0 0.0
    %1269 = vmatpush2.msra.mxu0 0.0
    %1270 = vmatprep.subr.mxu0 0.0
    %1271 = vmatpush2.msra.mxu0 0.0
    %1272 = vmatprep.subr.mxu0 0.0
    %1273 = vmatpush2.msra.mxu0 0.0
    %1274 = vmatprep.subr.mxu0 0.0
    %1275 = vmatpush2.msra.mxu0 0.0
    %1276 = vmatprep.subr.mxu0 0.0
    %1277 = vmatpush2.msra.mxu0 0.0
    %1278 = vmatprep.subr.mxu0 0.0
    %1279 = vmatpush2.msra.mxu0 0.0
    %1280 = vmatprep.subr.mxu0 0.0
    %1281 = vmatpush2.msra.mxu0 0.0
    %1282 = vmatprep.subr.mxu0 0.0
    %1283 = vmatpush2.msra.mxu0 0.0
    %1284 = vmatprep.subr.mxu0 0.0
    %1285 = vmatpush2.msra.mxu0 0.0
    %1286 = vmatprep.subr.mxu0 0.0
    %1287 = vmatpush2.msra.mxu0 0.0
    %1288 = vmatprep.mubr.f32.mxu0 0.0
    %1289 = vmatmul.mubr.f32.gmra.mxu0 %v1088
    %v1290 = vpop.f32.mrf.mxu0
    %v1291 = vadd.f32 0.0, %v1290
    %v1292 = vpop.f32.mrf.mxu0
    %1293 = vmatprep.mubr.f32.mxu0 0.0
    %1294 = vmatmul.mubr.f32.gmra.mxu0 %v1091
    %v1295 = vpop.f32.mrf.mxu0
    %v1296 = vadd.f32 0.0, %v1295
    %v1297 = vpop.f32.mrf.mxu0
    %1298 = vmatprep.mubr.f32.mxu0 0.0
    %1299 = vmatmul.mubr.f32.gmra.mxu0 %v1094
    %v1300 = vpop.f32.mrf.mxu0
    %v1301 = vadd.f32 0.0, %v1300
    %v1302 = vpop.f32.mrf.mxu0
    %1303 = vmatprep.mubr.f32.mxu0 0.0
    %1304 = vmatmul.mubr.f32.gmra.mxu0 %v1097
    %v1305 = vpop.f32.mrf.mxu0
    %v1306 = vadd.f32 0.0, %v1305
    %v1307 = vpop.f32.mrf.mxu0
    %1308 = vmatprep.mubr.f32.mxu0 0.0
    %1309 = vmatmul.mubr.f32.gmra.mxu0 %v1100
    %v1310 = vpop.f32.mrf.mxu0
    %v1311 = vadd.f32 0.0, %v1310
    %v1312 = vpop.f32.mrf.mxu0
    %1313 = vmatprep.mubr.f32.mxu0 0.0
    %1314 = vmatmul.mubr.f32.gmra.mxu0 %v1103
    %v1315 = vpop.f32.mrf.mxu0
    %v1316 = vadd.f32 0.0, %v1315
    %v1317 = vpop.f32.mrf.mxu0
    %1318 = vmatprep.mubr.f32.mxu0 0.0
    %1319 = vmatmul.mubr.f32.gmra.mxu0 %v1106
    %v1320 = vpop.f32.mrf.mxu0
    %v1321 = vadd.f32 0.0, %v1320
    %v1322 = vpop.f32.mrf.mxu0
    %1323 = vmatprep.mubr.f32.mxu0 0.0
    %1324 = vmatmul.mubr.f32.gmra.mxu0 %v1109
    %v1325 = vpop.f32.mrf.mxu0
    %v1326 = vadd.f32 0.0, %v1325
    %v1327 = vpop.f32.mrf.mxu0
    %1328 = vdwg.mxu0
    %v1330 = vsel %vm325, %v1291, 0
    %v1333 = vsel %vm325, %v1296, 0
    %v1336 = vsel %vm325, %v1301, 0
    %v1339 = vsel %vm325, %v1306, 0
    %v1342 = vsel %vm325, %v1311, 0
    %v1345 = vsel %vm325, %v1316, 0
    %v1348 = vsel %vm325, %v1321, 0
    %v1351 = vsel %vm325, %v1326, 0
    %1353 = vmatprep.subr.mxu0 0.0
    %1354 = vmatpush1.msra.mxu0 0.0
    %1355 = vmatprep.subr.mxu0 0.0
    %1356 = vmatpush1.msra.mxu0 0.0
    %1357 = vmatprep.subr.mxu0 0.0
    %1358 = vmatpush1.msra.mxu0 0.0
    %1359 = vmatprep.subr.mxu0 0.0
    %1360 = vmatpush1.msra.mxu0 0.0
    %1361 = vmatprep.subr.mxu0 0.0
    %1362 = vmatpush1.msra.mxu0 0.0
    %1363 = vmatprep.subr.mxu0 0.0
    %1364 = vmatpush1.msra.mxu0 0.0
    %1365 = vmatprep.subr.mxu0 0.0
    %1366 = vmatpush1.msra.mxu0 0.0
    %1367 = vmatprep.subr.mxu0 0.0
    %1368 = vmatpush1.msra.mxu0 0.0
    %1369 = vmatprep.subr.mxu0 0.0
    %1370 = vmatpush1.msra.mxu0 %v1223
    %1371 = vmatprep.subr.mxu0 0.0
    %1372 = vmatpush1.msra.mxu0 %v1222
    %1373 = vmatprep.subr.mxu0 0.0
    %1374 = vmatpush1.msra.mxu0 %v1221
    %1375 = vmatprep.subr.mxu0 0.0
    %1376 = vmatpush1.msra.mxu0 %v1220
    %1377 = vmatprep.subr.mxu0 0.0
    %1378 = vmatpush1.msra.mxu0 %v1219
    %1379 = vmatprep.subr.mxu0 0.0
    %1380 = vmatpush1.msra.mxu0 %v1218
    %1381 = vmatprep.subr.mxu0 0.0
    %1382 = vmatpush1.msra.mxu0 %v1217
    %1383 = vmatprep.subr.mxu0 0.0
    %1384 = vmatpush1.msra.mxu0 %v1216
    %1385 = vmatprep.subr.mxu0 0.0
    %1386 = vmatpush2.msra.mxu0 0.0
    %1387 = vmatprep.subr.mxu0 0.0
    %1388 = vmatpush2.msra.mxu0 0.0
    %1389 = vmatprep.subr.mxu0 0.0
    %1390 = vmatpush2.msra.mxu0 0.0
    %1391 = vmatprep.subr.mxu0 0.0
    %1392 = vmatpush2.msra.mxu0 0.0
    %1393 = vmatprep.subr.mxu0 0.0
    %1394 = vmatpush2.msra.mxu0 0.0
    %1395 = vmatprep.subr.mxu0 0.0
    %1396 = vmatpush2.msra.mxu0 0.0
    %1397 = vmatprep.subr.mxu0 0.0
    %1398 = vmatpush2.msra.mxu0 0.0
    %1399 = vmatprep.subr.mxu0 0.0
    %1400 = vmatpush2.msra.mxu0 0.0
    %1401 = vmatprep.subr.mxu0 0.0
    %1402 = vmatpush2.msra.mxu0 0.0
    %1403 = vmatprep.subr.mxu0 0.0
    %1404 = vmatpush2.msra.mxu0 0.0
    %1405 = vmatprep.subr.mxu0 0.0
    %1406 = vmatpush2.msra.mxu0 0.0
    %1407 = vmatprep.subr.mxu0 0.0
    %1408 = vmatpush2.msra.mxu0 0.0
    %1409 = vmatprep.subr.mxu0 0.0
    %1410 = vmatpush2.msra.mxu0 0.0
    %1411 = vmatprep.subr.mxu0 0.0
    %1412 = vmatpush2.msra.mxu0 0.0
    %1413 = vmatprep.subr.mxu0 0.0
    %1414 = vmatpush2.msra.mxu0 0.0
    %1415 = vmatprep.subr.mxu0 0.0
    %1416 = vmatpush2.msra.mxu0 0.0
    %1417 = vmatprep.mubr.f32.mxu0 0.0
    %1418 = vmatmul.mubr.f32.gmra.mxu0 %v1330
    %v1419 = vpop.f32.mrf.mxu0
    %v1420 = vadd.f32 0.0, %v1419
    %v1421 = vpop.f32.mrf.mxu0
    %1422 = vmatprep.mubr.f32.mxu0 0.0
    %1423 = vmatmul.mubr.f32.gmra.mxu0 %v1333
    %v1424 = vpop.f32.mrf.mxu0
    %v1425 = vadd.f32 0.0, %v1424
    %v1426 = vpop.f32.mrf.mxu0
    %1427 = vmatprep.mubr.f32.mxu0 0.0
    %1428 = vmatmul.mubr.f32.gmra.mxu0 %v1336
    %v1429 = vpop.f32.mrf.mxu0
    %v1430 = vadd.f32 0.0, %v1429
    %v1431 = vpop.f32.mrf.mxu0
    %1432 = vmatprep.mubr.f32.mxu0 0.0
    %1433 = vmatmul.mubr.f32.gmra.mxu0 %v1339
    %v1434 = vpop.f32.mrf.mxu0
    %v1435 = vadd.f32 0.0, %v1434
    %v1436 = vpop.f32.mrf.mxu0
    %1437 = vmatprep.mubr.f32.mxu0 0.0
    %1438 = vmatmul.mubr.f32.gmra.mxu0 %v1342
    %v1439 = vpop.f32.mrf.mxu0
    %v1440 = vadd.f32 0.0, %v1439
    %v1441 = vpop.f32.mrf.mxu0
    %1442 = vmatprep.mubr.f32.mxu0 0.0
    %1443 = vmatmul.mubr.f32.gmra.mxu0 %v1345
    %v1444 = vpop.f32.mrf.mxu0
    %v1445 = vadd.f32 0.0, %v1444
    %v1446 = vpop.f32.mrf.mxu0
    %1447 = vmatprep.mubr.f32.mxu0 0.0
    %1448 = vmatmul.mubr.f32.gmra.mxu0 %v1348
    %v1449 = vpop.f32.mrf.mxu0
    %v1450 = vadd.f32 0.0, %v1449
    %v1451 = vpop.f32.mrf.mxu0
    %1452 = vmatprep.mubr.f32.mxu0 0.0
    %1453 = vmatmul.mubr.f32.gmra.mxu0 %v1351
    %v1454 = vpop.f32.mrf.mxu0
    %v1455 = vadd.f32 0.0, %v1454
    %v1456 = vpop.f32.mrf.mxu0
    %1457 = vdwg.mxu0
    %v1458 = vadd.f32 %v1216, %v1420
    %v1459 = vadd.f32 %v1217, %v1425
    %v1460 = vadd.f32 %v1218, %v1430
    %v1461 = vadd.f32 %v1219, %v1435
    %v1462 = vadd.f32 %v1220, %v1440
    %v1463 = vadd.f32 %v1221, %v1445
    %v1464 = vadd.f32 %v1222, %v1450
    %v1465 = vadd.f32 %v1223, %v1455
    %1466 = vmatprep.subr.mxu0 0.0
    %1467 = vmatpush1.msra.mxu0 0.0
    %1468 = vmatprep.subr.mxu0 0.0
    %1469 = vmatpush1.msra.mxu0 0.0
    %1470 = vmatprep.subr.mxu0 0.0
    %1471 = vmatpush1.msra.mxu0 0.0
    %1472 = vmatprep.subr.mxu0 0.0
    %1473 = vmatpush1.msra.mxu0 0.0
    %1474 = vmatprep.subr.mxu0 0.0
    %1475 = vmatpush1.msra.mxu0 0.0
    %1476 = vmatprep.subr.mxu0 0.0
    %1477 = vmatpush1.msra.mxu0 0.0
    %1478 = vmatprep.subr.mxu0 0.0
    %1479 = vmatpush1.msra.mxu0 0.0
    %1480 = vmatprep.subr.mxu0 0.0
    %1481 = vmatpush1.msra.mxu0 0.0
    %1482 = vmatprep.subr.mxu0 0.0
    %1483 = vmatpush1.msra.mxu0 %v1326
    %1484 = vmatprep.subr.mxu0 0.0
    %1485 = vmatpush1.msra.mxu0 %v1321
    %1486 = vmatprep.subr.mxu0 0.0
    %1487 = vmatpush1.msra.mxu0 %v1316
    %1488 = vmatprep.subr.mxu0 0.0
    %1489 = vmatpush1.msra.mxu0 %v1311
    %1490 = vmatprep.subr.mxu0 0.0
    %1491 = vmatpush1.msra.mxu0 %v1306
    %1492 = vmatprep.subr.mxu0 0.0
    %1493 = vmatpush1.msra.mxu0 %v1301
    %1494 = vmatprep.subr.mxu0 0.0
    %1495 = vmatpush1.msra.mxu0 %v1296
    %1496 = vmatprep.subr.mxu0 0.0
    %1497 = vmatpush1.msra.mxu0 %v1291
    %1498 = vmatprep.subr.mxu0 0.0
    %1499 = vmatpush2.msra.mxu0 0.0
    %1500 = vmatprep.subr.mxu0 0.0
    %1501 = vmatpush2.msra.mxu0 0.0
    %1502 = vmatprep.subr.mxu0 0.0
    %1503 = vmatpush2.msra.mxu0 0.0
    %1504 = vmatprep.subr.mxu0 0.0
    %1505 = vmatpush2.msra.mxu0 0.0
    %1506 = vmatprep.subr.mxu0 0.0
    %1507 = vmatpush2.msra.mxu0 0.0
    %1508 = vmatprep.subr.mxu0 0.0
    %1509 = vmatpush2.msra.mxu0 0.0
    %1510 = vmatprep.subr.mxu0 0.0
    %1511 = vmatpush2.msra.mxu0 0.0
    %1512 = vmatprep.subr.mxu0 0.0
    %1513 = vmatpush2.msra.mxu0 0.0
    %1514 = vmatprep.subr.mxu0 0.0
    %1515 = vmatpush2.msra.mxu0 0.0
    %1516 = vmatprep.subr.mxu0 0.0
    %1517 = vmatpush2.msra.mxu0 0.0
    %1518 = vmatprep.subr.mxu0 0.0
    %1519 = vmatpush2.msra.mxu0 0.0
    %1520 = vmatprep.subr.mxu0 0.0
    %1521 = vmatpush2.msra.mxu0 0.0
    %1522 = vmatprep.subr.mxu0 0.0
    %1523 = vmatpush2.msra.mxu0 0.0
    %1524 = vmatprep.subr.mxu0 0.0
    %1525 = vmatpush2.msra.mxu0 0.0
    %1526 = vmatprep.subr.mxu0 0.0
    %1527 = vmatpush2.msra.mxu0 0.0
    %1528 = vmatprep.subr.mxu0 0.0
    %1529 = vmatpush2.msra.mxu0 0.0
    %1530 = vmatprep.mubr.f32.mxu0 0.0
    %1531 = vmatmul.mubr.f32.gmra.mxu0 %v1330
    %v1532 = vpop.f32.mrf.mxu0
    %v1533 = vadd.f32 0.0, %v1532
    %v1534 = vpop.f32.mrf.mxu0
    %1535 = vmatprep.mubr.f32.mxu0 0.0
    %1536 = vmatmul.mubr.f32.gmra.mxu0 %v1333
    %v1537 = vpop.f32.mrf.mxu0
    %v1538 = vadd.f32 0.0, %v1537
    %v1539 = vpop.f32.mrf.mxu0
    %1540 = vmatprep.mubr.f32.mxu0 0.0
    %1541 = vmatmul.mubr.f32.gmra.mxu0 %v1336
    %v1542 = vpop.f32.mrf.mxu0
    %v1543 = vadd.f32 0.0, %v1542
    %v1544 = vpop.f32.mrf.mxu0
    %1545 = vmatprep.mubr.f32.mxu0 0.0
    %1546 = vmatmul.mubr.f32.gmra.mxu0 %v1339
    %v1547 = vpop.f32.mrf.mxu0
    %v1548 = vadd.f32 0.0, %v1547
    %v1549 = vpop.f32.mrf.mxu0
    %1550 = vmatprep.mubr.f32.mxu0 0.0
    %1551 = vmatmul.mubr.f32.gmra.mxu0 %v1342
    %v1552 = vpop.f32.mrf.mxu0
    %v1553 = vadd.f32 0.0, %v1552
    %v1554 = vpop.f32.mrf.mxu0
    %1555 = vmatprep.mubr.f32.mxu0 0.0
    %1556 = vmatmul.mubr.f32.gmra.mxu0 %v1345
    %v1557 = vpop.f32.mrf.mxu0
    %v1558 = vadd.f32 0.0, %v1557
    %v1559 = vpop.f32.mrf.mxu0
    %1560 = vmatprep.mubr.f32.mxu0 0.0
    %1561 = vmatmul.mubr.f32.gmra.mxu0 %v1348
    %v1562 = vpop.f32.mrf.mxu0
    %v1563 = vadd.f32 0.0, %v1562
    %v1564 = vpop.f32.mrf.mxu0
    %1565 = vmatprep.mubr.f32.mxu0 0.0
    %1566 = vmatmul.mubr.f32.gmra.mxu0 %v1351
    %v1567 = vpop.f32.mrf.mxu0
    %v1568 = vadd.f32 0.0, %v1567
    %v1569 = vpop.f32.mrf.mxu0
    %1570 = vdwg.mxu0
    %v1572 = vsel %vm325, %v1533, 0
    %v1575 = vsel %vm325, %v1538, 0
    %v1578 = vsel %vm325, %v1543, 0
    %v1581 = vsel %vm325, %v1548, 0
    %v1584 = vsel %vm325, %v1553, 0
    %v1587 = vsel %vm325, %v1558, 0
    %v1590 = vsel %vm325, %v1563, 0
    %v1593 = vsel %vm325, %v1568, 0
    %1595 = vmatprep.subr.mxu0 0.0
    %1596 = vmatpush1.msra.mxu0 0.0
    %1597 = vmatprep.subr.mxu0 0.0
    %1598 = vmatpush1.msra.mxu0 0.0
    %1599 = vmatprep.subr.mxu0 0.0
    %1600 = vmatpush1.msra.mxu0 0.0
    %1601 = vmatprep.subr.mxu0 0.0
    %1602 = vmatpush1.msra.mxu0 0.0
    %1603 = vmatprep.subr.mxu0 0.0
    %1604 = vmatpush1.msra.mxu0 0.0
    %1605 = vmatprep.subr.mxu0 0.0
    %1606 = vmatpush1.msra.mxu0 0.0
    %1607 = vmatprep.subr.mxu0 0.0
    %1608 = vmatpush1.msra.mxu0 0.0
    %1609 = vmatprep.subr.mxu0 0.0
    %1610 = vmatpush1.msra.mxu0 0.0
    %1611 = vmatprep.subr.mxu0 0.0
    %1612 = vmatpush1.msra.mxu0 %v1465
    %1613 = vmatprep.subr.mxu0 0.0
    %1614 = vmatpush1.msra.mxu0 %v1464
    %1615 = vmatprep.subr.mxu0 0.0
    %1616 = vmatpush1.msra.mxu0 %v1463
    %1617 = vmatprep.subr.mxu0 0.0
    %1618 = vmatpush1.msra.mxu0 %v1462
    %1619 = vmatprep.subr.mxu0 0.0
    %1620 = vmatpush1.msra.mxu0 %v1461
    %1621 = vmatprep.subr.mxu0 0.0
    %1622 = vmatpush1.msra.mxu0 %v1460
    %1623 = vmatprep.subr.mxu0 0.0
    %1624 = vmatpush1.msra.mxu0 %v1459
    %1625 = vmatprep.subr.mxu0 0.0
    %1626 = vmatpush1.msra.mxu0 %v1458
    %1627 = vmatprep.subr.mxu0 0.0
    %1628 = vmatpush2.msra.mxu0 0.0
    %1629 = vmatprep.subr.mxu0 0.0
    %1630 = vmatpush2.msra.mxu0 0.0
    %1631 = vmatprep.subr.mxu0 0.0
    %1632 = vmatpush2.msra.mxu0 0.0
    %1633 = vmatprep.subr.mxu0 0.0
    %1634 = vmatpush2.msra.mxu0 0.0
    %1635 = vmatprep.subr.mxu0 0.0
    %1636 = vmatpush2.msra.mxu0 0.0
    %1637 = vmatprep.subr.mxu0 0.0
    %1638 = vmatpush2.msra.mxu0 0.0
    %1639 = vmatprep.subr.mxu0 0.0
    %1640 = vmatpush2.msra.mxu0 0.0
    %1641 = vmatprep.subr.mxu0 0.0
    %1642 = vmatpush2.msra.mxu0 0.0
    %1643 = vmatprep.subr.mxu0 0.0
    %1644 = vmatpush2.msra.mxu0 0.0
    %1645 = vmatprep.subr.mxu0 0.0
    %1646 = vmatpush2.msra.mxu0 0.0
    %1647 = vmatprep.subr.mxu0 0.0
    %1648 = vmatpush2.msra.mxu0 0.0
    %1649 = vmatprep.subr.mxu0 0.0
    %1650 = vmatpush2.msra.mxu0 0.0
    %1651 = vmatprep.subr.mxu0 0.0
    %1652 = vmatpush2.msra.mxu0 0.0
    %1653 = vmatprep.subr.mxu0 0.0
    %1654 = vmatpush2.msra.mxu0 0.0
    %1655 = vmatprep.subr.mxu0 0.0
    %1656 = vmatpush2.msra.mxu0 0.0
    %1657 = vmatprep.subr.mxu0 0.0
    %1658 = vmatpush2.msra.mxu0 0.0
    %1659 = vmatprep.mubr.f32.mxu0 0.0
    %1660 = vmatmul.mubr.f32.gmra.mxu0 %v1572
    %v1661 = vpop.f32.mrf.mxu0
    %v1662 = vadd.f32 0.0, %v1661
    %v1663 = vpop.f32.mrf.mxu0
    %1664 = vmatprep.mubr.f32.mxu0 0.0
    %1665 = vmatmul.mubr.f32.gmra.mxu0 %v1575
    %v1666 = vpop.f32.mrf.mxu0
    %v1667 = vadd.f32 0.0, %v1666
    %v1668 = vpop.f32.mrf.mxu0
    %1669 = vmatprep.mubr.f32.mxu0 0.0
    %1670 = vmatmul.mubr.f32.gmra.mxu0 %v1578
    %v1671 = vpop.f32.mrf.mxu0
    %v1672 = vadd.f32 0.0, %v1671
    %v1673 = vpop.f32.mrf.mxu0
    %1674 = vmatprep.mubr.f32.mxu0 0.0
    %1675 = vmatmul.mubr.f32.gmra.mxu0 %v1581
    %v1676 = vpop.f32.mrf.mxu0
    %v1677 = vadd.f32 0.0, %v1676
    %v1678 = vpop.f32.mrf.mxu0
    %1679 = vmatprep.mubr.f32.mxu0 0.0
    %1680 = vmatmul.mubr.f32.gmra.mxu0 %v1584
    %v1681 = vpop.f32.mrf.mxu0
    %v1682 = vadd.f32 0.0, %v1681
    %v1683 = vpop.f32.mrf.mxu0
    %1684 = vmatprep.mubr.f32.mxu0 0.0
    %1685 = vmatmul.mubr.f32.gmra.mxu0 %v1587
    %v1686 = vpop.f32.mrf.mxu0
    %v1687 = vadd.f32 0.0, %v1686
    %v1688 = vpop.f32.mrf.mxu0
    %1689 = vmatprep.mubr.f32.mxu0 0.0
    %1690 = vmatmul.mubr.f32.gmra.mxu0 %v1590
    %v1691 = vpop.f32.mrf.mxu0
    %v1692 = vadd.f32 0.0, %v1691
    %v1693 = vpop.f32.mrf.mxu0
    %1694 = vmatprep.mubr.f32.mxu0 0.0
    %1695 = vmatmul.mubr.f32.gmra.mxu0 %v1593
    %v1696 = vpop.f32.mrf.mxu0
    %v1697 = vadd.f32 0.0, %v1696
    %v1698 = vpop.f32.mrf.mxu0
    %1699 = vdwg.mxu0
    %v1700 = vadd.f32 %v1458, %v1662
    %v1701 = vadd.f32 %v1459, %v1667
    %v1702 = vadd.f32 %v1460, %v1672
    %v1703 = vadd.f32 %v1461, %v1677
    %v1704 = vadd.f32 %v1462, %v1682
    %v1705 = vadd.f32 %v1463, %v1687
    %v1706 = vadd.f32 %v1464, %v1692
    %v1707 = vadd.f32 %v1465, %v1697
    %1708 = vst [vmem:[#allocation5] sm:$0xff] %v1700
    %1709 = vst [vmem:[#allocation5 + $0x8] sm:$0xff] %v1701
    %1710 = vst [vmem:[#allocation5 + $0x10] sm:$0xff] %v1702
    %1711 = vst [vmem:[#allocation5 + $0x18] sm:$0xff] %v1703
    %1712 = vst [vmem:[#allocation5 + $0x20] sm:$0xff] %v1704
    %1713 = vst [vmem:[#allocation5 + $0x28] sm:$0xff] %v1705
    %1714 = vst [vmem:[#allocation5 + $0x30] sm:$0xff] %v1706
    %1715 = vst [vmem:[#allocation5 + $0x38] sm:$0xff] %v1707
    // Predicated region
    $region10: #{tpu_custom_call.1} parent=1 // pred_check
      _
    $region11: #{tpu_custom_call.1} parent=1 // pred_check_branch
      %1717 = sbr.rel (0) target = $region13
    $region12: #{tpu_custom_call.1} parent=1 // pred_region
      %s1719 = ssub.s32 1024, 1024
      %1720 = vsyncadd [#allocation4], %s1719
      %s1721 = sshll.u32 [#allocation5], 4
      %s1722 = int_to_ptr.vmem [resolvable:$true] %s1721
      %1727 = dma.vmem_to_hbm [thread:$0]  %s1722, 1024, %s1, [#allocation4], 128, 128, 8
    $region13: #{tpu_custom_call.1} parent=1 // pred_fallthru
      _
    // Predicated region
    $region14: #{tpu_custom_call.1} parent=1 // pred_check
      _
    $region15: #{tpu_custom_call.1} parent=1 // pred_check_branch
      %1729 = sbr.rel (0) target = $region17
    $region16: #{tpu_custom_call.1} parent=1 // pred_region
      %1730 = dma.done [#allocation4], 1024
    $region17: #{tpu_custom_call.1} parent=1 // pred_fallthru
      _
    %1731 = vsyncpa [#allocation3], 1
    %1732 = vsyncpa [#allocation4], 1

</llo_original>
